<compile_context>
chip_gen: v6e
topology: v6e:2x2x1
jax: 0.10.0
libtpu: 0.0.40
codegen_flags: <defaults>
</compile_context>

<pallas_src>
import functools
import math

import jax
import jax.numpy as jnp
from jax import lax
from jax.experimental import pallas as pl
from jax.experimental.pallas import tpu as pltpu

LANE = 128


def _round_up(x, m):
    return (x + m - 1) // m * m


def _nbytes(shape, dtype):
    return math.prod(shape) * jnp.dtype(dtype).itemsize


def _vmem_limit_bytes(footprint):
    """Generation-aware VMEM budget (~96 MiB on v5e/v6e, ~48 MiB on v7x)."""
    try:
        capacity = int(pltpu.get_tpu_info().vmem_capacity_bytes)
    except Exception:
        capacity = 64 << 20          # conservative default (v7x per-core VMEM)
    budget = (capacity * 3) // 4
    return int(min(max(2 * footprint, 16 << 20), budget))


# ---------------------------------------------------------------------------
# Fused Pallas kernel: all layers in one call; grid = (layer, edge_tile)
# ---------------------------------------------------------------------------
def gnn_fused_kernel(src_ref, dst_row_ref, x_ref, ea_ref,
                     wn_ref, bn_ref, we1_ref, be1_ref, we2_ref, be2_ref,
                     out_ref,
                     x_cur_ref, h_bf16_ref, agg_ref):
    l = pl.program_id(0)                 # layer axis (sequential)
    k = pl.program_id(1)                 # edge-tile axis (reduction)
    n_layers = pl.num_programs(0)
    n_edge_tiles = pl.num_programs(1)
    n_nodes = x_ref.shape[0]             # padded to a multiple of 128
    edge_tile = ea_ref.shape[0]

    # ---- layer-0 bootstrap: copy the (padded) input features into VMEM -----
    @pl.when(jnp.logical_and(l == 0, k == 0))
    def _bootstrap():
        x_cur_ref[...] = x_ref[...]

    # ---- per layer: node transform; accumulator starts at the f32 residual -
    @pl.when(k == 0)
    def _start_layer():
        h = jnp.dot(x_cur_ref[...], wn_ref[...],
                    preferred_element_type=jnp.float32) + bn_ref[...]
        h = jnp.maximum(h, 0.0)
        agg_ref[...] = h                          # residual carried in f32
        h_bf16_ref[...] = h.astype(jnp.bfloat16)  # MXU operand for the gather

    # ---- per edge tile: edge MLP (bf16 MXU operands, f32 accumulation) -----
    e = jnp.dot(ea_ref[...], we1_ref[...],
                preferred_element_type=jnp.float32) + be1_ref[...]
    e = jnp.maximum(e, 0.0)
    e = jnp.dot(e.astype(jnp.bfloat16), we2_ref[...],
                preferred_element_type=jnp.float32) + be2_ref[...]   # [TE, H]

    # ---- gather h[src]: compare -> bf16 one-hot, MXU matmul ----------------
    src = src_ref[...]                                        # [TE, 1] int32
    node_ids = lax.broadcasted_iota(jnp.int32, (edge_tile, n_nodes), 1)
    gather_oh = (src == node_ids).astype(jnp.bfloat16)        # [TE, N]
    h_src = jnp.dot(gather_oh, h_bf16_ref[...],
                    preferred_element_type=jnp.float32)       # [TE, H] == h[src]

    # ---- message + scatter-add (one-hot built pre-transposed: [N, TE]) -----
    msg = (h_src * e).astype(jnp.bfloat16)                    # [TE, H]
    dst_row = dst_row_ref[...]                                # [1, TE] int32
    node_ids_t = lax.broadcasted_iota(jnp.int32, (n_nodes, edge_tile), 0)
    scatter_oh_t = (dst_row == node_ids_t).astype(jnp.bfloat16)   # [N, TE]
    agg_ref[...] += jnp.dot(scatter_oh_t, msg,
                            preferred_element_type=jnp.float32)

    # ---- layer finalize: out_l = ReLU(h + sum msg); feed the next layer ----
    @pl.when(k == n_edge_tiles - 1)
    def _finish_layer():
        x_cur_ref[...] = jnp.maximum(agg_ref[...], 0.0).astype(jnp.bfloat16)

    @pl.when(jnp.logical_and(k == n_edge_tiles - 1, l == n_layers - 1))
    def _write_out():
        out_ref[...] = jnp.maximum(agg_ref[...], 0.0).astype(out_ref.dtype)


def gnn_pallas(stacked_params, x_pad, ea_pad, src_col, dst_row, *,
               edge_tile, feat_pad):
    wn_all, bn_all, we1_all, be1_all, we2_all, be2_all = stacked_params
    n_layers = wn_all.shape[0]
    n_node_pad = x_pad.shape[0]
    e_pad = ea_pad.shape[0]
    assert e_pad % edge_tile == 0
    grid = (n_layers, e_pad // edge_tile)

    def resident(shape):
        return pl.BlockSpec(shape, lambda l, k: (0,) * len(shape))

    def per_layer(shape):          # stacked (L, r, c): squeeze the layer dim
        return pl.BlockSpec((None,) + tuple(shape[1:]), lambda l, k: (l, 0, 0))

    in_specs = [
        pl.BlockSpec((edge_tile, 1), lambda l, k: (k, 0)),         # src (col)
        pl.BlockSpec((1, edge_tile), lambda l, k: (0, k)),         # dst (row)
        resident((n_node_pad, feat_pad)),                          # node feats
        pl.BlockSpec((edge_tile, feat_pad), lambda l, k: (k, 0)),  # edge feats
        per_layer(wn_all.shape), per_layer(bn_all.shape),
        per_layer(we1_all.shape), per_layer(be1_all.shape),
        per_layer(we2_all.shape), per_layer(be2_all.shape),
    ]
    out_specs = pl.BlockSpec((n_node_pad, feat_pad), lambda l, k: (0, 0))

    scratch_shapes = [
        pltpu.VMEM((n_node_pad, feat_pad), jnp.bfloat16),   # current layer input
        pltpu.VMEM((n_node_pad, feat_pad), jnp.bfloat16),   # h (bf16 MXU operand)
        pltpu.VMEM((n_node_pad, feat_pad), jnp.float32),    # residual + scatter acc
    ]

    # VMEM budget from the actual tile footprint (pipeline blocks x2 buffers).
    block_bytes = (
        _nbytes((edge_tile, 1), jnp.int32)
        + _nbytes((1, edge_tile), jnp.int32)
        + _nbytes((n_node_pad, feat_pad), jnp.bfloat16)          # x
        + _nbytes((edge_tile, feat_pad), jnp.bfloat16)           # edge_attr
        + 3 * _nbytes((feat_pad, feat_pad), jnp.bfloat16)        # Wn, We1, We2
        + 3 * _nbytes((1, feat_pad), jnp.bfloat16)               # biases
        + _nbytes((n_node_pad, feat_pad), jnp.bfloat16)          # output
    )
    scratch_bytes = (2 * _nbytes((n_node_pad, feat_pad), jnp.bfloat16)
                     + _nbytes((n_node_pad, feat_pad), jnp.float32))
    footprint = 2 * block_bytes + scratch_bytes

    return pl.pallas_call(
        gnn_fused_kernel,
        out_shape=jax.ShapeDtypeStruct((n_node_pad, feat_pad), jnp.bfloat16),
        grid=grid,
        in_specs=in_specs,
        out_specs=out_specs,
        scratch_shapes=scratch_shapes,
        compiler_params=pltpu.CompilerParams(
            dimension_semantics=("arbitrary", "arbitrary"),
            vmem_limit_bytes=_vmem_limit_bytes(footprint),
        ),
    )(src_col, dst_row, x_pad, ea_pad,
      wn_all, bn_all, we1_all, be1_all, we2_all, be2_all)


# ---------------------------------------------------------------------------
# GNN forward wrapper: padding + graph structure as index vectors
# ---------------------------------------------------------------------------
@functools.partial(jax.jit, static_argnames=("edge_tile", "feat_pad", "node_pad"))
def gnn_forward(stacked_params, x, edge_index, edge_attr, *,
                edge_tile, feat_pad, node_pad):
    n_nodes, node_in = x.shape
    n_edges, edge_in = edge_attr.shape
    e_pad = _round_up(max(n_edges, 1), edge_tile)
    pad = e_pad - n_edges

    # Lane-dense, zero-padded node / edge features (padding is exact).
    x_pad = jnp.zeros((node_pad, feat_pad), jnp.float32)
    x_pad = x_pad.at[:n_nodes, :node_in].set(x).astype(jnp.bfloat16)
    ea_pad = jnp.zeros((e_pad, feat_pad), jnp.float32)
    ea_pad = ea_pad.at[:n_edges, :edge_in].set(edge_attr).astype(jnp.bfloat16)

    # Graph structure as int32 index vectors.  Padded edges get
    # dst == node_pad: the in-kernel one-hot never matches, so their messages
    # are dropped exactly (sentinel kept at the PADDED node count).
    src = edge_index[0].astype(jnp.int32)
    dst = edge_index[1].astype(jnp.int32)
    src_col = jnp.concatenate([src, jnp.zeros((pad,), jnp.int32)])[:, None]
    dst_row = jnp.concatenate([dst, jnp.full((pad,), node_pad, jnp.int32)])[None, :]

    return gnn_pallas(stacked_params, x_pad, ea_pad, src_col, dst_row,
                      edge_tile=edge_tile, feat_pad=feat_pad)


# ---------------------------------------------------------------------------
# Parameter construction (deterministic, PyTorch Linear-style init)
# ---------------------------------------------------------------------------
def make_linear(key, fan_in, fan_out):
    kw, kb = jax.random.split(key)
    bound = 1.0 / math.sqrt(fan_in)
    w = jax.random.uniform(kw, (fan_in, fan_out), jnp.float32, -bound, bound)
    b = jax.random.uniform(kb, (1, fan_out), jnp.float32, -bound, bound)
    return w, b


def make_layer_params(key, node_in, edge_in, out_features):
    k1, k2, k3 = jax.random.split(key, 3)
    wn, bn = make_linear(k1, node_in, out_features)
    we1, be1 = make_linear(k2, edge_in, out_features)
    we2, be2 = make_linear(k3, out_features, out_features)
    return (wn, bn, we1, be1, we2, be2)


def make_gnn_params(key, node_in, edge_in, hidden, out_features):
    keys = jax.random.split(key, 6)
    dims = [(node_in, hidden)] + [(hidden, hidden)] * 4 + [(hidden, out_features)]
    return [make_layer_params(k, din, edge_in, dout)
            for k, (din, dout) in zip(keys, dims)]


def pad_stack_params_bf16(params, feat_pad):
    """Zero-pad every weight/bias to lane-dense (feat_pad) dims, cast bf16, and
    stack the layers on a leading axis.  Padding is exact: padded output lanes
    stay identically zero through every layer."""
    def pad2(w, rows, cols):
        assert w.shape[0] <= rows and w.shape[1] <= cols
        out = jnp.zeros((rows, cols), jnp.float32)
        out = out.at[:w.shape[0], :w.shape[1]].set(w)
        return out.astype(jnp.bfloat16)

    stacks = [[] for _ in range(6)]
    for (wn, bn, we1, be1, we2, be2) in params:
        stacks[0].append(pad2(wn, feat_pad, feat_pad))
        stacks[1].append(pad2(bn, 1, feat_pad))
        stacks[2].append(pad2(we1, feat_pad, feat_pad))
        stacks[3].append(pad2(be1, 1, feat_pad))
        stacks[4].append(pad2(we2, feat_pad, feat_pad))
        stacks[5].append(pad2(be2, 1, feat_pad))
    return tuple(jnp.stack(s) for s in stacks)


# ---------------------------------------------------------------------------
# Pure-JAX reference (same bf16/f32 mixed precision as the kernel)
# ---------------------------------------------------------------------------
def gnn_reference(stacked_params, x, edge_index, edge_attr, feat_pad):
    wn_all, bn_all, we1_all, be1_all, we2_all, be2_all = stacked_params
    n_nodes, node_in = x.shape
    n_edges, edge_in = edge_attr.shape
    src, dst = edge_index[0], edge_index[1]

    xp = jnp.zeros((n_nodes, feat_pad), jnp.float32).at[:, :node_in].set(x)
    eap = jnp.zeros((n_edges, feat_pad), jnp.float32).at[:, :edge_in].set(edge_attr)
    h_in = xp.astype(jnp.bfloat16)
    ea = eap.astype(jnp.bfloat16)

    for li in range(wn_all.shape[0]):
        h = jnp.dot(h_in, wn_all[li],
                    preferred_element_type=jnp.float32) + bn_all[li]
        h = jnp.maximum(h, 0.0)
        e = jnp.dot(ea, we1_all[li],
                    preferred_element_type=jnp.float32) + be1_all[li]
        e = jnp.maximum(e, 0.0)
        e = jnp.dot(e.astype(jnp.bfloat16), we2_all[li],
                    preferred_element_type=jnp.float32) + be2_all[li]
        h_src = h.astype(jnp.bfloat16)[src].astype(jnp.float32)
        msg = (h_src * e).astype(jnp.bfloat16).astype(jnp.float32)
        agg = jax.ops.segment_sum(msg, dst, num_segments=n_nodes)
        h_in = jnp.maximum(h + agg, 0.0).astype(jnp.bfloat16)
    return h_in


if __name__ == "__main__":
    # small deterministic problem
    N_NODES = 16
    N_EDGES = 60          # deliberately not a multiple of the edge tile
    NODE_IN = 8
    EDGE_IN = 4
    HIDDEN = 32
    OUT = 8

    FEAT_PAD = _round_up(max(NODE_IN, EDGE_IN, HIDDEN, OUT), LANE)   # 128 lanes
    NODE_PAD = _round_up(N_NODES, LANE)                              # 128 nodes
    EDGE_TILE = 256        # MXU-aligned edge tile (>=128 v5e, >=256 v6e/v7x)

    key = jax.random.PRNGKey(0)
    kx, ke, ki, kp = jax.random.split(key, 4)

    x = jax.random.normal(kx, (N_NODES, NODE_IN), jnp.float32)
    edge_attr = jax.random.normal(ke, (N_EDGES, EDGE_IN), jnp.float32)
    edge_index = jax.random.randint(ki, (2, N_EDGES), 0, N_NODES, jnp.int32)

    params = make_gnn_params(kp, NODE_IN, EDGE_IN, HIDDEN, OUT)
    stacked = pad_stack_params_bf16(params, FEAT_PAD)

    out_pad = gnn_forward(stacked, x, edge_index, edge_attr,
                          edge_tile=EDGE_TILE, feat_pad=FEAT_PAD,
                          node_pad=NODE_PAD)
    out_pad = jax.block_until_ready(out_pad)
    out = out_pad[:N_NODES, :OUT].astype(jnp.float32)

    assert out.shape == (N_NODES, OUT), out.shape
    assert bool(jnp.all(jnp.isfinite(out)))

    ref = gnn_reference(stacked, x, edge_index, edge_attr,
                        FEAT_PAD)[:, :OUT].astype(jnp.float32)
    assert bool(jnp.allclose(out, ref, rtol=2e-2, atol=2e-2)), \
        float(jnp.max(jnp.abs(out - ref)))

    print("KERNEL_OK")
</pallas_src>

<mosaic_0001>
module attributes {stable_mosaic.version = 11 : i64} {
  func.func @gnn_fused_kernel(%arg0: i32, %arg1: i32, %arg2: memref<256x1xi32, #tpu.memory_space<vmem>>, %arg3: memref<1x256xi32, #tpu.memory_space<vmem>>, %arg4: memref<128x128xbf16, #tpu.memory_space<vmem>>, %arg5: memref<256x128xbf16, #tpu.memory_space<vmem>>, %arg6: memref<1x128x128xbf16, #tpu.memory_space<vmem>>, %arg7: memref<1x1x128xbf16, #tpu.memory_space<vmem>>, %arg8: memref<1x128x128xbf16, #tpu.memory_space<vmem>>, %arg9: memref<1x1x128xbf16, #tpu.memory_space<vmem>>, %arg10: memref<1x128x128xbf16, #tpu.memory_space<vmem>>, %arg11: memref<1x1x128xbf16, #tpu.memory_space<vmem>>, %arg12: memref<128x128xbf16, #tpu.memory_space<vmem>>, %arg13: memref<128x128xbf16, #tpu.memory_space<vmem>>, %arg14: memref<128x128xbf16, #tpu.memory_space<vmem>>, %arg15: memref<128x128xf32, #tpu.memory_space<vmem>>) attributes {dimension_semantics = [#tpu.dimension_semantics<arbitrary>, #tpu.dimension_semantics<arbitrary>], iteration_bounds = array<i64: 6, 1>, scalar_prefetch = 0 : i64, scratch_operands = 3 : i64, tpu.core_type = #tpu.core_type<tc>, window_params = [{transform_indices = @transform_0, window_bounds = array<i64: 256, 1>}, {transform_indices = @transform_1, window_bounds = array<i64: 1, 256>}, {pipeline_mode = #tpu.pipeline_mode<synchronous>, transform_indices = @transform_2, window_bounds = array<i64: 128, 128>}, {transform_indices = @transform_3, window_bounds = array<i64: 256, 128>}, {transform_indices = @transform_4, window_bounds = array<i64: 1, 128, 128>}, {transform_indices = @transform_5, window_bounds = array<i64: 1, 1, 128>}, {transform_indices = @transform_6, window_bounds = array<i64: 1, 128, 128>}, {transform_indices = @transform_7, window_bounds = array<i64: 1, 1, 128>}, {transform_indices = @transform_8, window_bounds = array<i64: 1, 128, 128>}, {transform_indices = @transform_9, window_bounds = array<i64: 1, 1, 128>}, {pipeline_mode = #tpu.pipeline_mode<synchronous>, transform_indices = @transform_10, window_bounds = array<i64: 128, 128>}]} {
    %c0_i32 = arith.constant 0 : i32
    %0 = arith.cmpi eq, %arg0, %c0_i32 : i32
    %c0_i32_0 = arith.constant 0 : i32
    %1 = arith.cmpi eq, %arg1, %c0_i32_0 : i32
    %2 = arith.andi %0, %1 : i1
    %3 = arith.extui %2 : i1 to i32
    %c0_i32_1 = arith.constant 0 : i32
    %4 = arith.cmpi ne, %3, %c0_i32_1 : i32
    scf.if %4 {
      %c0_35 = arith.constant 0 : index
      %c0_36 = arith.constant 0 : index
      %58 = vector.load %arg4[%c0_35, %c0_36] : memref<128x128xbf16, #tpu.memory_space<vmem>>, vector<128x128xbf16>
      %c0_37 = arith.constant 0 : index
      %c0_38 = arith.constant 0 : index
      %59 = vector.load %arg13[%c0_37, %c0_38] : memref<128x128xbf16, #tpu.memory_space<vmem>>, vector<128x128xbf16>
      tpu.vector_store %arg13[%c0_37, %c0_38], %58 {strides = array<i32>} : memref<128x128xbf16, #tpu.memory_space<vmem>>, vector<128x128xbf16>,
    } else {
    }
    %c0_i32_2 = arith.constant 0 : i32
    %5 = arith.cmpi eq, %arg1, %c0_i32_2 : i32
    %6 = arith.extui %5 : i1 to i32
    %c0_i32_3 = arith.constant 0 : i32
    %7 = arith.cmpi ne, %6, %c0_i32_3 : i32
    scf.if %7 {
      %c0_35 = arith.constant 0 : index
      %c0_36 = arith.constant 0 : index
      %58 = vector.load %arg13[%c0_35, %c0_36] : memref<128x128xbf16, #tpu.memory_space<vmem>>, vector<128x128xbf16>
      %c0_37 = arith.constant 0 : index
      %c0_38 = arith.constant 0 : index
      %c0_39 = arith.constant 0 : index
      %59 = vector.load %arg6[%c0_37, %c0_38, %c0_39] : memref<1x128x128xbf16, #tpu.memory_space<vmem>>, vector<1x128x128xbf16>
      %60 = vector.shape_cast %59 : vector<1x128x128xbf16> to vector<128x128xbf16>
      %cst_40 = arith.constant dense<0.000000e+00> : vector<128x128xf32>
      %61 = tpu.matmul %58, %60, %cst_40 {dimension_numbers = #tpu.dot_dimension_numbers<[1], [0], [0], [1], [0, 0, 1, 1], [], []>} : vector<128x128xbf16>, vector<128x128xbf16>, vector<128x128xf32> -> vector<128x128xf32>
      %c0_41 = arith.constant 0 : index
      %c0_42 = arith.constant 0 : index
      %c0_43 = arith.constant 0 : index
      %62 = vector.load %arg7[%c0_41, %c0_42, %c0_43] : memref<1x1x128xbf16, #tpu.memory_space<vmem>>, vector<1x1x128xbf16>
      %63 = vector.shape_cast %62 : vector<1x1x128xbf16> to vector<1x128xbf16>
      %64 = arith.extf %63 : vector<1x128xbf16> to vector<1x128xf32>
      %65 = vector.broadcast %64 : vector<1x128xf32> to vector<128x128xf32>
      %66 = arith.addf %61, %65 : vector<128x128xf32>
      %cst_44 = arith.constant 0.000000e+00 : f32
      %67 = vector.broadcast %cst_44 : f32 to vector<128x128xf32>
      %68 = arith.maximumf %66, %67 : vector<128x128xf32>
      %c0_45 = arith.constant 0 : index
      %c0_46 = arith.constant 0 : index
      %69 = vector.load %arg15[%c0_45, %c0_46] : memref<128x128xf32, #tpu.memory_space<vmem>>, vector<128x128xf32>
      tpu.vector_store %arg15[%c0_45, %c0_46], %68 {strides = array<i32>} : memref<128x128xf32, #tpu.memory_space<vmem>>, vector<128x128xf32>,
      %70 = arith.truncf %68 : vector<128x128xf32> to vector<128x128xbf16>
      %c0_47 = arith.constant 0 : index
      %c0_48 = arith.constant 0 : index
      %71 = vector.load %arg14[%c0_47, %c0_48] : memref<128x128xbf16, #tpu.memory_space<vmem>>, vector<128x128xbf16>
      tpu.vector_store %arg14[%c0_47, %c0_48], %70 {strides = array<i32>} : memref<128x128xbf16, #tpu.memory_space<vmem>>, vector<128x128xbf16>,
    } else {
    }
    %c0 = arith.constant 0 : index
    %c0_4 = arith.constant 0 : index
    %8 = vector.load %arg5[%c0, %c0_4] : memref<256x128xbf16, #tpu.memory_space<vmem>>, vector<256x128xbf16>
    %c0_5 = arith.constant 0 : index
    %c0_6 = arith.constant 0 : index
    %c0_7 = arith.constant 0 : index
    %9 = vector.load %arg8[%c0_5, %c0_6, %c0_7] : memref<1x128x128xbf16, #tpu.memory_space<vmem>>, vector<1x128x128xbf16>
    %10 = vector.shape_cast %9 : vector<1x128x128xbf16> to vector<128x128xbf16>
    %cst = arith.constant dense<0.000000e+00> : vector<256x128xf32>
    %11 = tpu.matmul %8, %10, %cst {dimension_numbers = #tpu.dot_dimension_numbers<[1], [0], [0], [1], [0, 0, 1, 1], [], []>} : vector<256x128xbf16>, vector<128x128xbf16>, vector<256x128xf32> -> vector<256x128xf32>
    %c0_8 = arith.constant 0 : index
    %c0_9 = arith.constant 0 : index
    %c0_10 = arith.constant 0 : index
    %12 = vector.load %arg9[%c0_8, %c0_9, %c0_10] : memref<1x1x128xbf16, #tpu.memory_space<vmem>>, vector<1x1x128xbf16>
    %13 = vector.shape_cast %12 : vector<1x1x128xbf16> to vector<1x128xbf16>
    %14 = arith.extf %13 : vector<1x128xbf16> to vector<1x128xf32>
    %15 = vector.broadcast %14 : vector<1x128xf32> to vector<256x128xf32>
    %16 = arith.addf %11, %15 : vector<256x128xf32>
    %cst_11 = arith.constant 0.000000e+00 : f32
    %17 = vector.broadcast %cst_11 : f32 to vector<256x128xf32>
    %18 = arith.maximumf %16, %17 : vector<256x128xf32>
    %19 = arith.truncf %18 : vector<256x128xf32> to vector<256x128xbf16>
    %c0_12 = arith.constant 0 : index
    %c0_13 = arith.constant 0 : index
    %c0_14 = arith.constant 0 : index
    %20 = vector.load %arg10[%c0_12, %c0_13, %c0_14] : memref<1x128x128xbf16, #tpu.memory_space<vmem>>, vector<1x128x128xbf16>
    %21 = vector.shape_cast %20 : vector<1x128x128xbf16> to vector<128x128xbf16>
    %cst_15 = arith.constant dense<0.000000e+00> : vector<256x128xf32>
    %22 = tpu.matmul %19, %21, %cst_15 {dimension_numbers = #tpu.dot_dimension_numbers<[1], [0], [0], [1], [0, 0, 1, 1], [], []>} : vector<256x128xbf16>, vector<128x128xbf16>, vector<256x128xf32> -> vector<256x128xf32>
    %c0_16 = arith.constant 0 : index
    %c0_17 = arith.constant 0 : index
    %c0_18 = arith.constant 0 : index
    %23 = vector.load %arg11[%c0_16, %c0_17, %c0_18] : memref<1x1x128xbf16, #tpu.memory_space<vmem>>, vector<1x1x128xbf16>
    %24 = vector.shape_cast %23 : vector<1x1x128xbf16> to vector<1x128xbf16>
    %25 = arith.extf %24 : vector<1x128xbf16> to vector<1x128xf32>
    %26 = vector.broadcast %25 : vector<1x128xf32> to vector<256x128xf32>
    %27 = arith.addf %22, %26 : vector<256x128xf32>
    %c0_19 = arith.constant 0 : index
    %c0_20 = arith.constant 0 : index
    %28 = vector.load %arg2[%c0_19, %c0_20] : memref<256x1xi32, #tpu.memory_space<vmem>>, vector<256x1xi32>
    %29 = tpu.iota {dimensions = array<i32: 1>} : vector<256x128xi32>
    %30 = vector.broadcast %28 : vector<256x1xi32> to vector<256x128xi32>
    %31 = arith.cmpi eq, %30, %29 : vector<256x128xi32>
    %32 = arith.extui %31 : vector<256x128xi1> to vector<256x128xi32>
    %33 = arith.sitofp %32 : vector<256x128xi32> to vector<256x128xf32>
    %34 = arith.truncf %33 : vector<256x128xf32> to vector<256x128xbf16>
    %c0_21 = arith.constant 0 : index
    %c0_22 = arith.constant 0 : index
    %35 = vector.load %arg14[%c0_21, %c0_22] : memref<128x128xbf16, #tpu.memory_space<vmem>>, vector<128x128xbf16>
    %cst_23 = arith.constant dense<0.000000e+00> : vector<256x128xf32>
    %36 = tpu.matmul %34, %35, %cst_23 {dimension_numbers = #tpu.dot_dimension_numbers<[1], [0], [0], [1], [0, 0, 1, 1], [], []>} : vector<256x128xbf16>, vector<128x128xbf16>, vector<256x128xf32> -> vector<256x128xf32>
    %37 = arith.mulf %36, %27 : vector<256x128xf32>
    %38 = arith.truncf %37 : vector<256x128xf32> to vector<256x128xbf16>
    %c0_24 = arith.constant 0 : index
    %c0_25 = arith.constant 0 : index
    %39 = vector.load %arg3[%c0_24, %c0_25] : memref<1x256xi32, #tpu.memory_space<vmem>>, vector<1x256xi32>
    %40 = tpu.iota {dimensions = array<i32: 0>} : vector<128x256xi32>
    %41 = vector.broadcast %39 : vector<1x256xi32> to vector<128x256xi32>
    %42 = arith.cmpi eq, %41, %40 : vector<128x256xi32>
    %43 = arith.extui %42 : vector<128x256xi1> to vector<128x256xi32>
    %44 = arith.sitofp %43 : vector<128x256xi32> to vector<128x256xf32>
    %45 = arith.truncf %44 : vector<128x256xf32> to vector<128x256xbf16>
    %c0_26 = arith.constant 0 : index
    %c0_27 = arith.constant 0 : index
    %46 = vector.load %arg15[%c0_26, %c0_27] : memref<128x128xf32, #tpu.memory_space<vmem>>, vector<128x128xf32>
    %cst_28 = arith.constant dense<0.000000e+00> : vector<128x128xf32>
    %47 = tpu.matmul %45, %38, %cst_28 {dimension_numbers = #tpu.dot_dimension_numbers<[1], [0], [0], [1], [0, 0, 1, 1], [], []>} : vector<128x256xbf16>, vector<256x128xbf16>, vector<128x128xf32> -> vector<128x128xf32>
    %48 = arith.addf %46, %47 : vector<128x128xf32>
    %c0_29 = arith.constant 0 : index
    %c0_30 = arith.constant 0 : index
    %49 = vector.load %arg15[%c0_29, %c0_30] : memref<128x128xf32, #tpu.memory_space<vmem>>, vector<128x128xf32>
    tpu.vector_store %arg15[%c0_29, %c0_30], %48 {strides = array<i32>} : memref<128x128xf32, #tpu.memory_space<vmem>>, vector<128x128xf32>,
    %c0_i32_31 = arith.constant 0 : i32
    %50 = arith.cmpi eq, %arg1, %c0_i32_31 : i32
    %51 = arith.extui %50 : i1 to i32
    %c0_i32_32 = arith.constant 0 : i32
    %52 = arith.cmpi ne, %51, %c0_i32_32 : i32
    scf.if %52 {
      %c0_35 = arith.constant 0 : index
      %c0_36 = arith.constant 0 : index
      %58 = vector.load %arg15[%c0_35, %c0_36] : memref<128x128xf32, #tpu.memory_space<vmem>>, vector<128x128xf32>
      %cst_37 = arith.constant 0.000000e+00 : f32
      %59 = vector.broadcast %cst_37 : f32 to vector<128x128xf32>
      %60 = arith.maximumf %58, %59 : vector<128x128xf32>
      %61 = arith.truncf %60 : vector<128x128xf32> to vector<128x128xbf16>
      %c0_38 = arith.constant 0 : index
      %c0_39 = arith.constant 0 : index
      %62 = vector.load %arg13[%c0_38, %c0_39] : memref<128x128xbf16, #tpu.memory_space<vmem>>, vector<128x128xbf16>
      tpu.vector_store %arg13[%c0_38, %c0_39], %61 {strides = array<i32>} : memref<128x128xbf16, #tpu.memory_space<vmem>>, vector<128x128xbf16>,
    } else {
    }
    %c0_i32_33 = arith.constant 0 : i32
    %53 = arith.cmpi eq, %arg1, %c0_i32_33 : i32
    %c5_i32 = arith.constant 5 : i32
    %54 = arith.cmpi eq, %arg0, %c5_i32 : i32
    %55 = arith.andi %53, %54 : i1
    %56 = arith.extui %55 : i1 to i32
    %c0_i32_34 = arith.constant 0 : i32
    %57 = arith.cmpi ne, %56, %c0_i32_34 : i32
    scf.if %57 {
      %c0_35 = arith.constant 0 : index
      %c0_36 = arith.constant 0 : index
      %58 = vector.load %arg15[%c0_35, %c0_36] : memref<128x128xf32, #tpu.memory_space<vmem>>, vector<128x128xf32>
      %cst_37 = arith.constant 0.000000e+00 : f32
      %59 = vector.broadcast %cst_37 : f32 to vector<128x128xf32>
      %60 = arith.maximumf %58, %59 : vector<128x128xf32>
      %61 = arith.truncf %60 : vector<128x128xf32> to vector<128x128xbf16>
      %c0_38 = arith.constant 0 : index
      %c0_39 = arith.constant 0 : index
      %62 = vector.load %arg12[%c0_38, %c0_39] : memref<128x128xbf16, #tpu.memory_space<vmem>>, vector<128x128xbf16>
      tpu.vector_store %arg12[%c0_38, %c0_39], %61 {strides = array<i32>} : memref<128x128xbf16, #tpu.memory_space<vmem>>, vector<128x128xbf16>,
    } else {
    }
    return
  }
  func.func @transform_0(%arg0: i32, %arg1: i32) -> (i32, i32) {
    %c0_i32 = arith.constant 0 : i32
    %c0_i32_0 = arith.constant 0 : i32
    return %arg1, %c0_i32 : i32, i32
  }
  func.func @transform_1(%arg0: i32, %arg1: i32) -> (i32, i32) {
    %c0_i32 = arith.constant 0 : i32
    %c0_i32_0 = arith.constant 0 : i32
    return %c0_i32, %arg1 : i32, i32
  }
  func.func @transform_2(%arg0: i32, %arg1: i32) -> (i32, i32) {
    %c0_i32 = arith.constant 0 : i32
    %c0_i32_0 = arith.constant 0 : i32
    %c0_i32_1 = arith.constant 0 : i32
    return %c0_i32, %c0_i32_0 : i32, i32
  }
  func.func @transform_3(%arg0: i32, %arg1: i32) -> (i32, i32) {
    %c0_i32 = arith.constant 0 : i32
    %c0_i32_0 = arith.constant 0 : i32
    return %arg1, %c0_i32 : i32, i32
  }
  func.func @transform_4(%arg0: i32, %arg1: i32) -> (i32, i32, i32) {
    %c0_i32 = arith.constant 0 : i32
    %c0_i32_0 = arith.constant 0 : i32
    %c0_i32_1 = arith.constant 0 : i32
    return %arg0, %c0_i32, %c0_i32_0 : i32, i32, i32
  }
  func.func @transform_5(%arg0: i32, %arg1: i32) -> (i32, i32, i32) {
    %c0_i32 = arith.constant 0 : i32
    %c0_i32_0 = arith.constant 0 : i32
    %c0_i32_1 = arith.constant 0 : i32
    return %arg0, %c0_i32, %c0_i32_0 : i32, i32, i32
  }
  func.func @transform_6(%arg0: i32, %arg1: i32) -> (i32, i32, i32) {
    %c0_i32 = arith.constant 0 : i32
    %c0_i32_0 = arith.constant 0 : i32
    %c0_i32_1 = arith.constant 0 : i32
    return %arg0, %c0_i32, %c0_i32_0 : i32, i32, i32
  }
  func.func @transform_7(%arg0: i32, %arg1: i32) -> (i32, i32, i32) {
    %c0_i32 = arith.constant 0 : i32
    %c0_i32_0 = arith.constant 0 : i32
    %c0_i32_1 = arith.constant 0 : i32
    return %arg0, %c0_i32, %c0_i32_0 : i32, i32, i32
  }
  func.func @transform_8(%arg0: i32, %arg1: i32) -> (i32, i32, i32) {
    %c0_i32 = arith.constant 0 : i32
    %c0_i32_0 = arith.constant 0 : i32
    %c0_i32_1 = arith.constant 0 : i32
    return %arg0, %c0_i32, %c0_i32_0 : i32, i32, i32
  }
  func.func @transform_9(%arg0: i32, %arg1: i32) -> (i32, i32, i32) {
    %c0_i32 = arith.constant 0 : i32
    %c0_i32_0 = arith.constant 0 : i32
    %c0_i32_1 = arith.constant 0 : i32
    return %arg0, %c0_i32, %c0_i32_0 : i32, i32, i32
  }
  func.func @transform_10(%arg0: i32, %arg1: i32) -> (i32, i32) {
    %c0_i32 = arith.constant 0 : i32
    %c0_i32_0 = arith.constant 0 : i32
    %c0_i32_1 = arith.constant 0 : i32
    return %c0_i32, %c0_i32_0 : i32, i32
  }
}

</mosaic_0001>

<llo_original>
// kernel: gnn_forward.1
$region0: #{gnn_forward.1}
  #allocation0 [shape = 'u32[]', space=smem, size = 0x4, offset = 0x4, fixed_abs, tag = 'smem constant byte address 0x4 - core index']
  #allocation1 [shape = 'u32[144,128]{1,0:T(1,128)}', space=vmem, size = 0x12000, scoped, tag = 'internal scratch']
  #allocation2 [shape = 'bf16[128,128]{1,0:T(8,128)(2,1)}', space=vmem, size = 0x8000, scoped, tag = 'scratch operand']
  #allocation3 [shape = 'bf16[128,128]{1,0:T(8,128)(2,1)}', space=vmem, size = 0x8000, scoped, tag = 'scratch operand']
  #allocation4 [shape = 'f32[128,128]{1,0:T(8,128)}', space=vmem, size = 0x10000, scoped, tag = 'scratch operand']
  %s0 = inlined_call_operand.vmem [shape: s32[256,1], index: 0, kind: input, shape index: {}]
  %s1 = inlined_call_operand.vmem [shape: s32[1,256], index: 1, kind: input, shape index: {}]
  %s2 = inlined_call_operand.vmem [shape: bf16[128,128], index: 2, kind: input, shape index: {}]
  %s3 = inlined_call_operand.vmem [shape: bf16[256,128], index: 3, kind: input, shape index: {}]
  %s4 = inlined_call_operand.vmem [shape: bf16[6,128,128], index: 4, kind: input, shape index: {}]
  %s5 = inlined_call_operand.vmem [shape: bf16[6,1,128], index: 5, kind: input, shape index: {}]
  %s6 = inlined_call_operand.hbm [shape: bf16[6,128,128], index: 6, kind: input, shape index: {}]
  %s7 = inlined_call_operand.vmem [shape: bf16[6,1,128], index: 7, kind: input, shape index: {}]
  %s8 = inlined_call_operand.hbm [shape: bf16[6,128,128], index: 8, kind: input, shape index: {}]
  %s9 = inlined_call_operand.vmem [shape: bf16[6,1,128], index: 9, kind: input, shape index: {}]
  %s10 = inlined_call_operand.hbm [shape: bf16[128,128], index: 10, kind: output, shape index: {}]
  %s11 = sld [smem:[#allocation0]]
  $region97: #{gnn_forward.1} parent=0
    _
  %s13 = ssub.s32 1, %s11
  %s14 = scalar_select 0, %s13, %s11
  $region1: #{gnn_forward.1} parent=0
    #allocation5 [shape = 'u8[65536]{0}', space=vmem, size = 0x10000, scoped, tag = 'input window, operand 6']
    #allocation6 [shape = 's32[2]{0}', space=sflag, size = 0x8, scoped, tag = 'scoped memory for gnn_forward.1']
    #allocation7 [shape = 's32[2]{0}', space=sflag, size = 0x8, scoped, tag = 'scoped memory for gnn_forward.1']
    #allocation8 [shape = 'u8[65536]{0}', space=vmem, size = 0x10000, scoped, tag = 'input window, operand 8']
    #allocation9 [shape = 's32[2]{0}', space=sflag, size = 0x8, scoped, tag = 'scoped memory for gnn_forward.1']
    #allocation10 [shape = 'u8[32768]{0}', space=vmem, size = 0x8000, scoped, tag = 'output window, operand 0, single buffered']
    %15 = vsyncpa [#allocation6], 0
    %s16 = scalar_lea.sflag [#allocation6], 1
    %17 = vsyncpa %s16, 0
    %18 = vsyncpa [#allocation9], 0
    %s19 = scalar_lea.sflag [#allocation9], 1
    %20 = vsyncpa %s19, 0
    %21 = vsyncpa [#allocation7], 0
    loop: start=0, step=1, limit=8
    $region2: #{gnn_forward.1} parent=1 // loop_pre_header
      _
    $region3: #{gnn_forward.1} parent=1 // loop_header
      %s23 = sphi 0, %s27
      %p24 = scmp.ge.s32.totalorder %s23, 8
      %s30 = sphi 0, %s42
      %s31 = sphi 0, %s38
      %s32 = sphi 0, %s30
      %s33 = sphi 0, %s31
      %s34 = sphi 0, %s32
      %s35 = sphi 0, %s33
      %s45 = sphi 0, %s47
      %s48 = sphi 0, %s45
      %s49 = sphi 0, %s48
      %s65 = sphi 0, %s49
      %s71 = sphi 0, %s73
      %s74 = sphi 0, %s71
      %s75 = sphi 0, %s74
      %s91 = sphi 0, %s75
      %s95 = sphi 0, %s95
      %s97 = sphi 0, %s95
      %s98 = sphi 0, %s97
      %s112 = sphi 0, %s98
      %s118 = sphi 0, %s120
      %s121 = sphi 0, %s118
      %s122 = sphi 0, %s121
      %s138 = sphi 0, %s122
      %s144 = sphi 0, %s146
      %s147 = sphi 0, %s144
      %s148 = sphi 0, %s147
      %s164 = sphi 0, %s148
      %s170 = sphi 0, %s172
      %s173 = sphi 0, %s170
      %s174 = sphi 0, %s173
      %s190 = sphi 0, %s174
      %s196 = sphi 0, %s198
      %s199 = sphi 0, %s196
      %s200 = sphi 0, %s199
      %s216 = sphi 0, %s200
      %s222 = sphi 0, %s224
      %s225 = sphi 0, %s222
      %s226 = sphi 0, %s225
      %s242 = sphi 0, %s226
      %s248 = sphi 0, %s250
      %s251 = sphi 0, %s248
      %s252 = sphi 0, %s251
      %s268 = sphi 0, %s252
      %s274 = sphi 0, %s276
      %s277 = sphi 0, %s274
      %s278 = sphi 0, %s277
      %s294 = sphi 0, %s278
      %s298 = sphi 0, %s298
      %s300 = sphi 0, %s298
      %s301 = sphi 0, %s300
      %s315 = sphi 0, %s301
    $region4: #{gnn_forward.1} parent=1 // loop_header_branch
      %26 = sbr.rel (%p24) target = $region8
    $region5: #{gnn_forward.1} parent=1 // loop_body
      %s28 = ssub.s32 %s23, 1
      %s29 = ssub.s32 %s23, 2
      %s36 = sadd.s32 1, %s31
      %p37 = scmp.ge.s32.totalorder %s36, 1
      %s38 = scalar_select %p37, 0, %s36
      %s39 = sadd.s32 1, %s30
      %s40 = scalar_select %p37, %s39, %s30
      %p41 = scmp.ge.s32.totalorder %s40, 6
      %s42 = scalar_select %p41, 0, %s40
      %s43 = ssub.s32 %s31, %s38
      %p44 = scmp.eq.s32.totalorder %s43, 0
      %s46 = sadd.s32 %s45, 1
      %s47 = scalar_select %p44, %s45, %s46
      %p50 = pneg %p44
      %p51 = scmp.eq.s32.totalorder %s23, 5
      %p52 = por %p50, %p51
      %p53 = scmp.ne.s32.totalorder %s45, %s48
      %p54 = scmp.eq.s32.totalorder %s23, 0
      %p55 = por %p53, %p54
      %p56 = scmp.ne.s32.totalorder %s45, %s48
      %p57 = scmp.eq.s32.totalorder %s28, 5
      %p58 = por %p56, %p57
      %p59 = scmp.ne.s32.totalorder %s48, %s49
      %p60 = scmp.eq.s32.totalorder %s28, 0
      %p61 = por %p59, %p60
      %p62 = scmp.ne.s32.totalorder %s48, %s49
      %p63 = scmp.eq.s32.totalorder %s29, 5
      %p64 = por %p62, %p63
      %p66 = scmp.ne.s32.totalorder %s49, %s65
      %p67 = scmp.eq.s32.totalorder %s29, 0
      %p68 = por %p66, %p67
      %s69 = ssub.s32 %s31, %s38
      %p70 = scmp.eq.s32.totalorder %s69, 0
      %s72 = sadd.s32 %s71, 1
      %s73 = scalar_select %p70, %s71, %s72
      %p76 = pneg %p70
      %p77 = scmp.eq.s32.totalorder %s23, 5
      %p78 = por %p76, %p77
      %p79 = scmp.ne.s32.totalorder %s71, %s74
      %p80 = scmp.eq.s32.totalorder %s23, 0
      %p81 = por %p79, %p80
      %p82 = scmp.ne.s32.totalorder %s71, %s74
      %p83 = scmp.eq.s32.totalorder %s28, 5
      %p84 = por %p82, %p83
      %p85 = scmp.ne.s32.totalorder %s74, %s75
      %p86 = scmp.eq.s32.totalorder %s28, 0
      %p87 = por %p85, %p86
      %p88 = scmp.ne.s32.totalorder %s74, %s75
      %p89 = scmp.eq.s32.totalorder %s29, 5
      %p90 = por %p88, %p89
      %p92 = scmp.ne.s32.totalorder %s75, %s91
      %p93 = scmp.eq.s32.totalorder %s29, 0
      %p94 = por %p92, %p93
      %s96 = sadd.s32 %s95, 1
      %p99 = scmp.eq.s32.totalorder %s23, 5
      %p100 = scmp.ne.s32.totalorder %s95, %s97
      %p101 = scmp.eq.s32.totalorder %s23, 0
      %p102 = por %p100, %p101
      %p103 = scmp.ne.s32.totalorder %s95, %s97
      %p104 = scmp.eq.s32.totalorder %s28, 5
      %p105 = por %p103, %p104
      %p106 = scmp.ne.s32.totalorder %s97, %s98
      %p107 = scmp.eq.s32.totalorder %s28, 0
      %p108 = por %p106, %p107
      %p109 = scmp.ne.s32.totalorder %s97, %s98
      %p110 = scmp.eq.s32.totalorder %s29, 5
      %p111 = por %p109, %p110
      %p113 = scmp.ne.s32.totalorder %s98, %s112
      %p114 = scmp.eq.s32.totalorder %s29, 0
      %p115 = por %p113, %p114
      %s116 = ssub.s32 %s31, %s38
      %p117 = scmp.eq.s32.totalorder %s116, 0
      %s119 = sadd.s32 %s118, 1
      %s120 = scalar_select %p117, %s118, %s119
      %p123 = pneg %p117
      %p124 = scmp.eq.s32.totalorder %s23, 5
      %p125 = por %p123, %p124
      %p126 = scmp.ne.s32.totalorder %s118, %s121
      %p127 = scmp.eq.s32.totalorder %s23, 0
      %p128 = por %p126, %p127
      %p129 = scmp.ne.s32.totalorder %s118, %s121
      %p130 = scmp.eq.s32.totalorder %s28, 5
      %p131 = por %p129, %p130
      %p132 = scmp.ne.s32.totalorder %s121, %s122
      %p133 = scmp.eq.s32.totalorder %s28, 0
      %p134 = por %p132, %p133
      %p135 = scmp.ne.s32.totalorder %s121, %s122
      %p136 = scmp.eq.s32.totalorder %s29, 5
      %p137 = por %p135, %p136
      %p139 = scmp.ne.s32.totalorder %s122, %s138
      %p140 = scmp.eq.s32.totalorder %s29, 0
      %p141 = por %p139, %p140
      %s142 = ssub.s32 %s30, %s42
      %p143 = scmp.eq.s32.totalorder %s142, 0
      %s145 = sadd.s32 %s144, 1
      %s146 = scalar_select %p143, %s144, %s145
      %p149 = pneg %p143
      %p150 = scmp.eq.s32.totalorder %s23, 5
      %p151 = por %p149, %p150
      %p152 = scmp.ne.s32.totalorder %s144, %s147
      %p153 = scmp.eq.s32.totalorder %s23, 0
      %p154 = por %p152, %p153
      %p155 = scmp.ne.s32.totalorder %s144, %s147
      %p156 = scmp.eq.s32.totalorder %s28, 5
      %p157 = por %p155, %p156
      %p158 = scmp.ne.s32.totalorder %s147, %s148
      %p159 = scmp.eq.s32.totalorder %s28, 0
      %p160 = por %p158, %p159
      %p161 = scmp.ne.s32.totalorder %s147, %s148
      %p162 = scmp.eq.s32.totalorder %s29, 5
      %p163 = por %p161, %p162
      %p165 = scmp.ne.s32.totalorder %s148, %s164
      %p166 = scmp.eq.s32.totalorder %s29, 0
      %p167 = por %p165, %p166
      %s168 = ssub.s32 %s30, %s42
      %p169 = scmp.eq.s32.totalorder %s168, 0
      %s171 = sadd.s32 %s170, 1
      %s172 = scalar_select %p169, %s170, %s171
      %p175 = pneg %p169
      %p176 = scmp.eq.s32.totalorder %s23, 5
      %p177 = por %p175, %p176
      %p178 = scmp.ne.s32.totalorder %s170, %s173
      %p179 = scmp.eq.s32.totalorder %s23, 0
      %p180 = por %p178, %p179
      %p181 = scmp.ne.s32.totalorder %s170, %s173
      %p182 = scmp.eq.s32.totalorder %s28, 5
      %p183 = por %p181, %p182
      %p184 = scmp.ne.s32.totalorder %s173, %s174
      %p185 = scmp.eq.s32.totalorder %s28, 0
      %p186 = por %p184, %p185
      %p187 = scmp.ne.s32.totalorder %s173, %s174
      %p188 = scmp.eq.s32.totalorder %s29, 5
      %p189 = por %p187, %p188
      %p191 = scmp.ne.s32.totalorder %s174, %s190
      %p192 = scmp.eq.s32.totalorder %s29, 0
      %p193 = por %p191, %p192
      %s194 = ssub.s32 %s30, %s42
      %p195 = scmp.eq.s32.totalorder %s194, 0
      %s197 = sadd.s32 %s196, 1
      %s198 = scalar_select %p195, %s196, %s197
      %p201 = pneg %p195
      %p202 = scmp.eq.s32.totalorder %s23, 5
      %p203 = por %p201, %p202
      %p204 = scmp.ne.s32.totalorder %s196, %s199
      %p205 = scmp.eq.s32.totalorder %s23, 0
      %p206 = por %p204, %p205
      %p207 = scmp.ne.s32.totalorder %s196, %s199
      %p208 = scmp.eq.s32.totalorder %s28, 5
      %p209 = por %p207, %p208
      %p210 = scmp.ne.s32.totalorder %s199, %s200
      %p211 = scmp.eq.s32.totalorder %s28, 0
      %p212 = por %p210, %p211
      %p213 = scmp.ne.s32.totalorder %s199, %s200
      %p214 = scmp.eq.s32.totalorder %s29, 5
      %p215 = por %p213, %p214
      %p217 = scmp.ne.s32.totalorder %s200, %s216
      %p218 = scmp.eq.s32.totalorder %s29, 0
      %p219 = por %p217, %p218
      %s220 = ssub.s32 %s30, %s42
      %p221 = scmp.eq.s32.totalorder %s220, 0
      %s223 = sadd.s32 %s222, 1
      %s224 = scalar_select %p221, %s222, %s223
      %p227 = pneg %p221
      %p228 = scmp.eq.s32.totalorder %s23, 5
      %p229 = por %p227, %p228
      %p230 = scmp.ne.s32.totalorder %s222, %s225
      %p231 = scmp.eq.s32.totalorder %s23, 0
      %p232 = por %p230, %p231
      %p233 = scmp.ne.s32.totalorder %s222, %s225
      %p234 = scmp.eq.s32.totalorder %s28, 5
      %p235 = por %p233, %p234
      %p236 = scmp.ne.s32.totalorder %s225, %s226
      %p237 = scmp.eq.s32.totalorder %s28, 0
      %p238 = por %p236, %p237
      %p239 = scmp.ne.s32.totalorder %s225, %s226
      %p240 = scmp.eq.s32.totalorder %s29, 5
      %p241 = por %p239, %p240
      %p243 = scmp.ne.s32.totalorder %s226, %s242
      %p244 = scmp.eq.s32.totalorder %s29, 0
      %p245 = por %p243, %p244
      %s246 = ssub.s32 %s30, %s42
      %p247 = scmp.eq.s32.totalorder %s246, 0
      %s249 = sadd.s32 %s248, 1
      %s250 = scalar_select %p247, %s248, %s249
      %p253 = pneg %p247
      %p254 = scmp.eq.s32.totalorder %s23, 5
      %p255 = por %p253, %p254
      %p256 = scmp.ne.s32.totalorder %s248, %s251
      %p257 = scmp.eq.s32.totalorder %s23, 0
      %p258 = por %p256, %p257
      %p259 = scmp.ne.s32.totalorder %s248, %s251
      %p260 = scmp.eq.s32.totalorder %s28, 5
      %p261 = por %p259, %p260
      %p262 = scmp.ne.s32.totalorder %s251, %s252
      %p263 = scmp.eq.s32.totalorder %s28, 0
      %p264 = por %p262, %p263
      %p265 = scmp.ne.s32.totalorder %s251, %s252
      %p266 = scmp.eq.s32.totalorder %s29, 5
      %p267 = por %p265, %p266
      %p269 = scmp.ne.s32.totalorder %s252, %s268
      %p270 = scmp.eq.s32.totalorder %s29, 0
      %p271 = por %p269, %p270
      %s272 = ssub.s32 %s30, %s42
      %p273 = scmp.eq.s32.totalorder %s272, 0
      %s275 = sadd.s32 %s274, 1
      %s276 = scalar_select %p273, %s274, %s275
      %p279 = pneg %p273
      %p280 = scmp.eq.s32.totalorder %s23, 5
      %p281 = por %p279, %p280
      %p282 = scmp.ne.s32.totalorder %s274, %s277
      %p283 = scmp.eq.s32.totalorder %s23, 0
      %p284 = por %p282, %p283
      %p285 = scmp.ne.s32.totalorder %s274, %s277
      %p286 = scmp.eq.s32.totalorder %s28, 5
      %p287 = por %p285, %p286
      %p288 = scmp.ne.s32.totalorder %s277, %s278
      %p289 = scmp.eq.s32.totalorder %s28, 0
      %p290 = por %p288, %p289
      %p291 = scmp.ne.s32.totalorder %s277, %s278
      %p292 = scmp.eq.s32.totalorder %s29, 5
      %p293 = por %p291, %p292
      %p295 = scmp.ne.s32.totalorder %s278, %s294
      %p296 = scmp.eq.s32.totalorder %s29, 0
      %p297 = por %p295, %p296
      %s299 = sadd.s32 %s298, 1
      %p302 = scmp.eq.s32.totalorder %s23, 5
      %p303 = scmp.ne.s32.totalorder %s298, %s300
      %p304 = scmp.eq.s32.totalorder %s23, 0
      %p305 = por %p303, %p304
      %p306 = scmp.ne.s32.totalorder %s298, %s300
      %p307 = scmp.eq.s32.totalorder %s28, 5
      %p308 = por %p306, %p307
      %p309 = scmp.ne.s32.totalorder %s300, %s301
      %p310 = scmp.eq.s32.totalorder %s28, 0
      %p311 = por %p309, %p310
      %p312 = scmp.ne.s32.totalorder %s300, %s301
      %p313 = scmp.eq.s32.totalorder %s29, 5
      %p314 = por %p312, %p313
      %p316 = scmp.ne.s32.totalorder %s301, %s315
      %p317 = scmp.eq.s32.totalorder %s29, 0
      %p318 = por %p316, %p317
      %p319 = scmp.le.s32.totalorder 1, %s23
      %p320 = scmp.lt.s32.totalorder %s23, 7
      %p321 = pnand %p319, %p320
      %p322 = pneg %p321
      // Predicated region
      $region9: #{gnn_forward.1} parent=5 // pred_check
        _
      $region10: #{gnn_forward.1} parent=5 // pred_check_branch
        %324 = sbr.rel (%p321) target = $region12
      $region11: #{gnn_forward.1} parent=5 // pred_region
        %s325 = ssub.s32 %s23, 1
        // Predicated region
        $region13: #{gnn_forward.1} parent=11 // pred_check
          %p326 = pneg %p61
        $region14: #{gnn_forward.1} parent=11 // pred_check_branch
          %328 = sbr.rel (%p326) target = $region16
        $region15: #{gnn_forward.1} parent=11 // pred_region
          %s329 = smul.u32 32, %s33
          %p330 = scmp.lt.s32.totalorder %s329, 31
          %s331 = scalar_select %p330, %s329, 31
          %s332 = smul.addr %s331, 8
          %s333 = scalar_lea.vmem %s0, %s332
          %s334 = smul.u32 32, %s33
        $region16: #{gnn_forward.1} parent=11 // pred_fallthru
          _
        // Predicated region
        $region17: #{gnn_forward.1} parent=11 // pred_check
          %p335 = pneg %p87
        $region18: #{gnn_forward.1} parent=11 // pred_check_branch
          %337 = sbr.rel (%p335) target = $region20
        $region19: #{gnn_forward.1} parent=11 // pred_region
          %s338 = smul.u32 2, %s33
          %p339 = scmp.lt.s32.totalorder %s338, 1
          %s340 = scalar_select %p339, %s338, 1
          %s341 = scalar_lea.vmem %s1, %s340
          %s342 = smul.u32 2, %s33
        $region20: #{gnn_forward.1} parent=11 // pred_fallthru
          _
        // Predicated region
        $region21: #{gnn_forward.1} parent=11 // pred_check
          %p343 = pneg %p108
        $region22: #{gnn_forward.1} parent=11 // pred_check_branch
          %345 = sbr.rel (%p343) target = $region24
        $region23: #{gnn_forward.1} parent=11 // pred_region
          _
        $region24: #{gnn_forward.1} parent=11 // pred_fallthru
          _
        // Predicated region
        $region25: #{gnn_forward.1} parent=11 // pred_check
          %p346 = pneg %p134
        $region26: #{gnn_forward.1} parent=11 // pred_check_branch
          %348 = sbr.rel (%p346) target = $region28
        $region27: #{gnn_forward.1} parent=11 // pred_region
          %s349 = smul.u32 32, %s33
          %p350 = scmp.lt.s32.totalorder %s349, 31
          %s351 = scalar_select %p350, %s349, 31
          %s352 = smul.addr %s351, 4
          %s353 = scalar_lea.vmem %s3, %s352
          %s354 = smul.u32 32, %s33
        $region28: #{gnn_forward.1} parent=11 // pred_fallthru
          _
      $region12: #{gnn_forward.1} parent=5 // pred_fallthru
        _
      %p355 = scmp.lt.s32.totalorder %s23, 6
      // Predicated region
      $region29: #{gnn_forward.1} parent=5 // pred_check
        %p356 = pneg %p355
      $region30: #{gnn_forward.1} parent=5 // pred_check_branch
        %358 = sbr.rel (%p356) target = $region32
      $region31: #{gnn_forward.1} parent=5 // pred_region
        // Predicated region
        $region33: #{gnn_forward.1} parent=31 // pred_check
          %p359 = pneg %p154
        $region34: #{gnn_forward.1} parent=31 // pred_check_branch
          %361 = sbr.rel (%p359) target = $region36
        $region35: #{gnn_forward.1} parent=31 // pred_region
          %p362 = scmp.lt.s32.totalorder %s30, 5
          %s363 = scalar_select %p362, %s30, 5
          %s364 = smul.addr %s363, 16
          %s365 = smul.addr %s364, 4
          %s366 = scalar_lea.vmem %s4, %s365
        $region36: #{gnn_forward.1} parent=31 // pred_fallthru
          _
        // Predicated region
        $region37: #{gnn_forward.1} parent=31 // pred_check
          %p367 = pneg %p180
        $region38: #{gnn_forward.1} parent=31 // pred_check_branch
          %369 = sbr.rel (%p367) target = $region40
        $region39: #{gnn_forward.1} parent=31 // pred_region
          %p370 = scmp.lt.s32.totalorder %s30, 5
          %s371 = scalar_select %p370, %s30, 5
          %s372 = scalar_lea.vmem %s5, %s371
        $region40: #{gnn_forward.1} parent=31 // pred_fallthru
          _
        // Predicated region
        $region41: #{gnn_forward.1} parent=31 // pred_check
          %p373 = pneg %p206
        $region42: #{gnn_forward.1} parent=31 // pred_check_branch
          %375 = sbr.rel (%p373) target = $region44
        $region43: #{gnn_forward.1} parent=31 // pred_region
          %s376 = sand.u32 %s196, 1
          %s377 = scalar_lea.sflag [#allocation6], %s376
          %s378 = sand.u32 %s196, 1
          %s379 = smul.addr %s378, 64
          %s380 = scalar_lea.vmem [#allocation5], %s379
          %s382 = ssub.s32 1024, 1024
          %383 = vsyncadd %s377, %s382
          %s384 = smul.addr %s30, 16
          %s385 = smul.addr %s384, 64
          %s386 = scalar_lea.hbm %s6, %s385
          %s387 = sshll.u32 %s380, 4
          %s388 = int_to_ptr.vmem [resolvable:$true] %s387
          %393 = dma.hbm_to_vmem [thread:$0]  %s386, 1024, %s388, %s377, 64, 64, 4
        $region44: #{gnn_forward.1} parent=31 // pred_fallthru
          _
        // Predicated region
        $region45: #{gnn_forward.1} parent=31 // pred_check
          %p394 = pneg %p232
        $region46: #{gnn_forward.1} parent=31 // pred_check_branch
          %396 = sbr.rel (%p394) target = $region48
        $region47: #{gnn_forward.1} parent=31 // pred_region
          %p397 = scmp.lt.s32.totalorder %s30, 5
          %s398 = scalar_select %p397, %s30, 5
          %s399 = scalar_lea.vmem %s7, %s398
        $region48: #{gnn_forward.1} parent=31 // pred_fallthru
          _
        // Predicated region
        $region49: #{gnn_forward.1} parent=31 // pred_check
          %p400 = pneg %p258
        $region50: #{gnn_forward.1} parent=31 // pred_check_branch
          %402 = sbr.rel (%p400) target = $region52
        $region51: #{gnn_forward.1} parent=31 // pred_region
          %s403 = sand.u32 %s248, 1
          %s404 = scalar_lea.sflag [#allocation9], %s403
          %s405 = sand.u32 %s248, 1
          %s406 = smul.addr %s405, 64
          %s407 = scalar_lea.vmem [#allocation8], %s406
          %s409 = ssub.s32 1024, 1024
          %410 = vsyncadd %s404, %s409
          %s411 = smul.addr %s30, 16
          %s412 = smul.addr %s411, 64
          %s413 = scalar_lea.hbm %s8, %s412
          %s414 = sshll.u32 %s407, 4
          %s415 = int_to_ptr.vmem [resolvable:$true] %s414
          %420 = dma.hbm_to_vmem [thread:$0]  %s413, 1024, %s415, %s404, 64, 64, 4
        $region52: #{gnn_forward.1} parent=31 // pred_fallthru
          _
        // Predicated region
        $region53: #{gnn_forward.1} parent=31 // pred_check
          %p421 = pneg %p284
        $region54: #{gnn_forward.1} parent=31 // pred_check_branch
          %423 = sbr.rel (%p421) target = $region56
        $region55: #{gnn_forward.1} parent=31 // pred_region
          %p424 = scmp.lt.s32.totalorder %s30, 5
          %s425 = scalar_select %p424, %s30, 5
          %s426 = scalar_lea.vmem %s9, %s425
        $region56: #{gnn_forward.1} parent=31 // pred_fallthru
          _
      $region32: #{gnn_forward.1} parent=5 // pred_fallthru
        _
      %p427 = scmp.le.s32.totalorder 1, %s23
      %p428 = scmp.lt.s32.totalorder %s23, 7
      %p429 = pnand %p427, %p428
      %p430 = pneg %p429
      // Predicated region
      $region57: #{gnn_forward.1} parent=5 // pred_check
        _
      $region58: #{gnn_forward.1} parent=5 // pred_check_branch
        %432 = sbr.rel (%p429) target = $region60
      $region59: #{gnn_forward.1} parent=5 // pred_region
        %s433 = ssub.s32 %s23, 1
        %s434 = sand.u32 %s199, 1
        %s435 = scalar_lea.sflag [#allocation6], %s434
        %s436 = sand.u32 %s199, 1
        %s437 = smul.addr %s436, 64
        %s438 = scalar_lea.vmem [#allocation5], %s437
        // Predicated region
        $region61: #{gnn_forward.1} parent=59 // pred_check
          %p439 = pneg %p212
        $region62: #{gnn_forward.1} parent=59 // pred_check_branch
          %441 = sbr.rel (%p439) target = $region64
        $region63: #{gnn_forward.1} parent=59 // pred_region
          %442 = dma.done %s435, 1024
        $region64: #{gnn_forward.1} parent=59 // pred_fallthru
          _
        %s443 = sand.u32 %s251, 1
        %s444 = scalar_lea.sflag [#allocation9], %s443
        %s445 = sand.u32 %s251, 1
        %s446 = smul.addr %s445, 64
        %s447 = scalar_lea.vmem [#allocation8], %s446
        // Predicated region
        $region65: #{gnn_forward.1} parent=59 // pred_check
          %p448 = pneg %p264
        $region66: #{gnn_forward.1} parent=59 // pred_check_branch
          %450 = sbr.rel (%p448) target = $region68
        $region67: #{gnn_forward.1} parent=59 // pred_region
          %451 = dma.done %s444, 1024
        $region68: #{gnn_forward.1} parent=59 // pred_fallthru
          _
        %s452 = smul.u32 32, %s33
        %p453 = scmp.lt.s32.totalorder %s452, 31
        %s454 = scalar_select %p453, %s452, 31
        %s455 = smul.addr %s454, 8
        %s456 = scalar_lea.vmem %s0, %s455
        %p457 = pneg %p61
        %p458 = pneg %p58
        %s459 = smul.u32 2, %s33
        %p460 = scmp.lt.s32.totalorder %s459, 1
        %s461 = scalar_select %p460, %s459, 1
        %s462 = scalar_lea.vmem %s1, %s461
        %p463 = pneg %p87
        %p464 = pneg %p84
        %p465 = pneg %p108
        %p466 = pneg %p105
        %s467 = smul.u32 32, %s33
        %p468 = scmp.lt.s32.totalorder %s467, 31
        %s469 = scalar_select %p468, %s467, 31
        %s470 = smul.addr %s469, 4
        %s471 = scalar_lea.vmem %s3, %s470
        %p472 = pneg %p134
        %p473 = pneg %p131
        %p474 = scmp.lt.s32.totalorder %s32, 5
        %s475 = scalar_select %p474, %s32, 5
        %s476 = smul.addr %s475, 16
        %s477 = smul.addr %s476, 4
        %s478 = scalar_lea.vmem %s4, %s477
        %p479 = pneg %p160
        %p480 = pneg %p157
        %p481 = scmp.lt.s32.totalorder %s32, 5
        %s482 = scalar_select %p481, %s32, 5
        %s483 = scalar_lea.vmem %s5, %s482
        %p484 = pneg %p186
        %p485 = pneg %p183
        %s486 = sand.u32 %s199, 1
        %s487 = scalar_lea.sflag [#allocation6], %s486
        %s488 = sand.u32 %s199, 1
        %s489 = smul.addr %s488, 64
        %s490 = scalar_lea.vmem [#allocation5], %s489
        %p491 = pneg %p212
        %p492 = pneg %p209
        %p493 = scmp.lt.s32.totalorder %s32, 5
        %s494 = scalar_select %p493, %s32, 5
        %s495 = scalar_lea.vmem %s7, %s494
        %p496 = pneg %p238
        %p497 = pneg %p235
        %s498 = sand.u32 %s251, 1
        %s499 = scalar_lea.sflag [#allocation9], %s498
        %s500 = sand.u32 %s251, 1
        %s501 = smul.addr %s500, 64
        %s502 = scalar_lea.vmem [#allocation8], %s501
        %p503 = pneg %p264
        %p504 = pneg %p261
        %p505 = scmp.lt.s32.totalorder %s32, 5
        %s506 = scalar_select %p505, %s32, 5
        %s507 = scalar_lea.vmem %s9, %s506
        %p508 = pneg %p290
        %p509 = pneg %p287
        %p510 = pneg %p311
        %p511 = pneg %p308
        %s512 = smul.u32 32, %s33
        %p513 = scmp.lt.s32.totalorder %s512, 31
        %s514 = scalar_select %p513, %s512, 31
        %s515 = smul.addr %s514, 8
        %s516 = scalar_lea.vmem %s0, %s515
        %s517 = smul.u32 32, %s33
        %s518 = smul.u32 2, %s33
        %p519 = scmp.lt.s32.totalorder %s518, 1
        %s520 = scalar_select %p519, %s518, 1
        %s521 = scalar_lea.vmem %s1, %s520
        %s522 = smul.u32 2, %s33
        %s523 = smul.u32 32, %s33
        %p524 = scmp.lt.s32.totalorder %s523, 31
        %s525 = scalar_select %p524, %s523, 31
        %s526 = smul.addr %s525, 4
        %s527 = scalar_lea.vmem %s3, %s526
        %s528 = smul.u32 32, %s33
        %p529 = scmp.lt.s32.totalorder %s32, 5
        %s530 = scalar_select %p529, %s32, 5
        %s531 = smul.addr %s530, 16
        %s532 = smul.addr %s531, 4
        %s533 = scalar_lea.vmem %s4, %s532
        %p534 = scmp.lt.s32.totalorder %s32, 5
        %s535 = scalar_select %p534, %s32, 5
        %s536 = scalar_lea.vmem %s5, %s535
        %p537 = scmp.lt.s32.totalorder %s32, 5
        %s538 = scalar_select %p537, %s32, 5
        %s539 = scalar_lea.vmem %s7, %s538
        %p540 = scmp.lt.s32.totalorder %s32, 5
        %s541 = scalar_select %p540, %s32, 5
        %s542 = scalar_lea.vmem %s9, %s541
        %p544 = scmp.eq.s32.totalorder %s32, 0
        %p545 = scmp.eq.s32.totalorder %s33, 0
        %p546 = pnand %p544, %p545
        %p547 = pneg %p546
        // Predicated region
        $region69: #{gnn_forward.1} parent=59 // pred_check
          _
        $region70: #{gnn_forward.1} parent=59 // pred_check_branch
          %549 = sbr.rel (%p546) target = $region72
        $region71: #{gnn_forward.1} parent=59 // pred_region
          %v550 = vld [vmem:[%s2] sm:$0xf]
          %v551 = vld [vmem:[%s2 + $0x4] sm:$0xf]
          %v552 = vld [vmem:[%s2 + $0x8] sm:$0xf]
          %v553 = vld [vmem:[%s2 + $0xc] sm:$0xf]
          %v554 = vld [vmem:[%s2 + $0x10] sm:$0xf]
          %v555 = vld [vmem:[%s2 + $0x14] sm:$0xf]
          %v556 = vld [vmem:[%s2 + $0x18] sm:$0xf]
          %v557 = vld [vmem:[%s2 + $0x1c] sm:$0xf]
          %v558 = vld [vmem:[%s2 + $0x20] sm:$0xf]
          %v559 = vld [vmem:[%s2 + $0x24] sm:$0xf]
          %v560 = vld [vmem:[%s2 + $0x28] sm:$0xf]
          %v561 = vld [vmem:[%s2 + $0x2c] sm:$0xf]
          %v562 = vld [vmem:[%s2 + $0x30] sm:$0xf]
          %v563 = vld [vmem:[%s2 + $0x34] sm:$0xf]
          %v564 = vld [vmem:[%s2 + $0x38] sm:$0xf]
          %v565 = vld [vmem:[%s2 + $0x3c] sm:$0xf]
          %566 = vst [vmem:[#allocation2] sm:$0xf] %v550
          %567 = vst [vmem:[#allocation2 + $0x4] sm:$0xf] %v551
          %568 = vst [vmem:[#allocation2 + $0x8] sm:$0xf] %v552
          %569 = vst [vmem:[#allocation2 + $0xc] sm:$0xf] %v553
          %570 = vst [vmem:[#allocation2 + $0x10] sm:$0xf] %v554
          %571 = vst [vmem:[#allocation2 + $0x14] sm:$0xf] %v555
          %572 = vst [vmem:[#allocation2 + $0x18] sm:$0xf] %v556
          %573 = vst [vmem:[#allocation2 + $0x1c] sm:$0xf] %v557
          %574 = vst [vmem:[#allocation2 + $0x20] sm:$0xf] %v558
          %575 = vst [vmem:[#allocation2 + $0x24] sm:$0xf] %v559
          %576 = vst [vmem:[#allocation2 + $0x28] sm:$0xf] %v560
          %577 = vst [vmem:[#allocation2 + $0x2c] sm:$0xf] %v561
          %578 = vst [vmem:[#allocation2 + $0x30] sm:$0xf] %v562
          %579 = vst [vmem:[#allocation2 + $0x34] sm:$0xf] %v563
          %580 = vst [vmem:[#allocation2 + $0x38] sm:$0xf] %v564
          %581 = vst [vmem:[#allocation2 + $0x3c] sm:$0xf] %v565
        $region72: #{gnn_forward.1} parent=59 // pred_fallthru
          _
        // Predicated region
        $region73: #{gnn_forward.1} parent=59 // pred_check
          %p582 = pneg %p545
        $region74: #{gnn_forward.1} parent=59 // pred_check_branch
          %584 = sbr.rel (%p582) target = $region76
        $region75: #{gnn_forward.1} parent=59 // pred_region
          %v585 = vld [vmem:[#allocation2] sm:$0xf]
          %v586 = vld [vmem:[#allocation2 + $0x4] sm:$0xf]
          %v587 = vld [vmem:[#allocation2 + $0x8] sm:$0xf]
          %v588 = vld [vmem:[#allocation2 + $0xc] sm:$0xf]
          %v589 = vld [vmem:[#allocation2 + $0x10] sm:$0xf]
          %v590 = vld [vmem:[#allocation2 + $0x14] sm:$0xf]
          %v591 = vld [vmem:[#allocation2 + $0x18] sm:$0xf]
          %v592 = vld [vmem:[#allocation2 + $0x1c] sm:$0xf]
          %v593 = vld [vmem:[#allocation2 + $0x20] sm:$0xf]
          %v594 = vld [vmem:[#allocation2 + $0x24] sm:$0xf]
          %v595 = vld [vmem:[#allocation2 + $0x28] sm:$0xf]
          %v596 = vld [vmem:[#allocation2 + $0x2c] sm:$0xf]
          %v597 = vld [vmem:[#allocation2 + $0x30] sm:$0xf]
          %v598 = vld [vmem:[#allocation2 + $0x34] sm:$0xf]
          %v599 = vld [vmem:[#allocation2 + $0x38] sm:$0xf]
          %v600 = vld [vmem:[#allocation2 + $0x3c] sm:$0xf]
          %v601 = vld [vmem:[%s533] sm:$0xf]
          %v602 = vld [vmem:[%s533 + $0x4] sm:$0xf]
          %v603 = vld [vmem:[%s533 + $0x8] sm:$0xf]
          %v604 = vld [vmem:[%s533 + $0xc] sm:$0xf]
          %v605 = vld [vmem:[%s533 + $0x10] sm:$0xf]
          %v606 = vld [vmem:[%s533 + $0x14] sm:$0xf]
          %v607 = vld [vmem:[%s533 + $0x18] sm:$0xf]
          %v608 = vld [vmem:[%s533 + $0x1c] sm:$0xf]
          %v609 = vld [vmem:[%s533 + $0x20] sm:$0xf]
          %v610 = vld [vmem:[%s533 + $0x24] sm:$0xf]
          %v611 = vld [vmem:[%s533 + $0x28] sm:$0xf]
          %v612 = vld [vmem:[%s533 + $0x2c] sm:$0xf]
          %v613 = vld [vmem:[%s533 + $0x30] sm:$0xf]
          %v614 = vld [vmem:[%s533 + $0x34] sm:$0xf]
          %v615 = vld [vmem:[%s533 + $0x38] sm:$0xf]
          %v616 = vld [vmem:[%s533 + $0x3c] sm:$0xf]
          %v617 = vld [vmem:[%s536] sm:$0x1]
          %v618 = vunpack.c.l.bf16 %v617
          %v619 = vlaneseq
          %v620 = vshrl.u32 %v619, 7
          %v621 = vsub.s32 0, %v620
          %v622 = vrot.slane %v618, %v621
          %v639 = vunpack.c.l.b16 %v585
          %v640 = vunpack.c.l.b16 %v586
          %v641 = vunpack.c.l.b16 %v587
          %v642 = vunpack.c.l.b16 %v588
          %v643 = vunpack.c.l.b16 %v589
          %v644 = vunpack.c.l.b16 %v590
          %v645 = vunpack.c.l.b16 %v591
          %v646 = vunpack.c.l.b16 %v592
          %v647 = vunpack.c.l.b16 %v593
          %v648 = vunpack.c.l.b16 %v594
          %v649 = vunpack.c.l.b16 %v595
          %v650 = vunpack.c.l.b16 %v596
          %v651 = vunpack.c.l.b16 %v597
          %v652 = vunpack.c.l.b16 %v598
          %v653 = vunpack.c.l.b16 %v599
          %v654 = vunpack.c.l.b16 %v600
          %v655 = vpack.c.b16 %v640, %v639
          %v656 = vpack.c.b16 %v642, %v641
          %v657 = vpack.c.b16 %v644, %v643
          %v658 = vpack.c.b16 %v646, %v645
          %v659 = vpack.c.b16 %v648, %v647
          %v660 = vpack.c.b16 %v650, %v649
          %v661 = vpack.c.b16 %v652, %v651
          %v662 = vpack.c.b16 %v654, %v653
          %v687 = vunpack.c.l.b16 %v601
          %v688 = vunpack.c.l.b16 %v602
          %v689 = vunpack.c.l.b16 %v603
          %v690 = vunpack.c.l.b16 %v604
          %v691 = vunpack.c.l.b16 %v605
          %v692 = vunpack.c.l.b16 %v606
          %v693 = vunpack.c.l.b16 %v607
          %v694 = vunpack.c.l.b16 %v608
          %v695 = vunpack.c.l.b16 %v609
          %v696 = vunpack.c.l.b16 %v610
          %v697 = vunpack.c.l.b16 %v611
          %v698 = vunpack.c.l.b16 %v612
          %v699 = vunpack.c.l.b16 %v613
          %v700 = vunpack.c.l.b16 %v614
          %v701 = vunpack.c.l.b16 %v615
          %v702 = vunpack.c.l.b16 %v616
          %v703 = vpack.c.b16 %v688, %v687
          %v704 = vpack.c.b16 %v690, %v689
          %v705 = vpack.c.b16 %v692, %v691
          %v706 = vpack.c.b16 %v694, %v693
          %v707 = vpack.c.b16 %v696, %v695
          %v708 = vpack.c.b16 %v698, %v697
          %v709 = vpack.c.b16 %v700, %v699
          %v710 = vpack.c.b16 %v702, %v701
          %719 = vmatprep.subr.bf16.mxu0 0
          %720 = vmatpush1.bf16.msra.mxu0 %v710
          %721 = vmatprep.subr.bf16.mxu0 0
          %722 = vmatpush1.bf16.msra.mxu0 %v709
          %723 = vmatprep.subr.bf16.mxu0 0
          %724 = vmatpush1.bf16.msra.mxu0 %v708
          %725 = vmatprep.subr.bf16.mxu0 0
          %726 = vmatpush1.bf16.msra.mxu0 %v707
          %727 = vmatprep.subr.bf16.mxu0 0
          %728 = vmatpush1.bf16.msra.mxu0 %v706
          %729 = vmatprep.subr.bf16.mxu0 0
          %730 = vmatpush1.bf16.msra.mxu0 %v705
          %731 = vmatprep.subr.bf16.mxu0 0
          %732 = vmatpush1.bf16.msra.mxu0 %v704
          %733 = vmatprep.subr.bf16.mxu0 0
          %734 = vmatpush1.bf16.msra.mxu0 %v703
          %735 = vmatprep.subr.bf16.mxu0 0
          %736 = vmatpush2.bf16.msra.mxu0 0
          %737 = vmatprep.subr.bf16.mxu0 0
          %738 = vmatpush2.bf16.msra.mxu0 0
          %739 = vmatprep.subr.bf16.mxu0 0
          %740 = vmatpush2.bf16.msra.mxu0 0
          %741 = vmatprep.subr.bf16.mxu0 0
          %742 = vmatpush2.bf16.msra.mxu0 0
          %743 = vmatprep.subr.bf16.mxu0 0
          %744 = vmatpush2.bf16.msra.mxu0 0
          %745 = vmatprep.subr.bf16.mxu0 0
          %746 = vmatpush2.bf16.msra.mxu0 0
          %747 = vmatprep.subr.bf16.mxu0 0
          %748 = vmatpush2.bf16.msra.mxu0 0
          %749 = vmatprep.subr.bf16.mxu0 0
          %750 = vmatpush2.bf16.msra.mxu0 0
          %751 = vmatprep.mubr.bf16.mxu0 0
          %752 = vmatmul.mubr.bf16.gmra.mxu0 %v655
          %v753 = vpop.f32.mrf.mxu0
          %v754 = vadd.f32 %v622, %v753
          %v755 = vpop.f32.mrf.mxu0
          %v756 = vpop.f32.mrf.mxu0
          %v757 = vadd.f32 %v622, %v756
          %v758 = vpop.f32.mrf.mxu0
          %759 = vmatprep.mubr.bf16.mxu0 0
          %760 = vmatmul.mubr.bf16.gmra.mxu0 %v656
          %v761 = vpop.f32.mrf.mxu0
          %v762 = vadd.f32 %v622, %v761
          %v763 = vpop.f32.mrf.mxu0
          %v764 = vpop.f32.mrf.mxu0
          %v765 = vadd.f32 %v622, %v764
          %v766 = vpop.f32.mrf.mxu0
          %767 = vmatprep.mubr.bf16.mxu0 0
          %768 = vmatmul.mubr.bf16.gmra.mxu0 %v657
          %v769 = vpop.f32.mrf.mxu0
          %v770 = vadd.f32 %v622, %v769
          %v771 = vpop.f32.mrf.mxu0
          %v772 = vpop.f32.mrf.mxu0
          %v773 = vadd.f32 %v622, %v772
          %v774 = vpop.f32.mrf.mxu0
          %775 = vmatprep.mubr.bf16.mxu0 0
          %776 = vmatmul.mubr.bf16.gmra.mxu0 %v658
          %v777 = vpop.f32.mrf.mxu0
          %v778 = vadd.f32 %v622, %v777
          %v779 = vpop.f32.mrf.mxu0
          %v780 = vpop.f32.mrf.mxu0
          %v781 = vadd.f32 %v622, %v780
          %v782 = vpop.f32.mrf.mxu0
          %783 = vmatprep.mubr.bf16.mxu0 0
          %784 = vmatmul.mubr.bf16.gmra.mxu0 %v659
          %v785 = vpop.f32.mrf.mxu0
          %v786 = vadd.f32 %v622, %v785
          %v787 = vpop.f32.mrf.mxu0
          %v788 = vpop.f32.mrf.mxu0
          %v789 = vadd.f32 %v622, %v788
          %v790 = vpop.f32.mrf.mxu0
          %791 = vmatprep.mubr.bf16.mxu0 0
          %792 = vmatmul.mubr.bf16.gmra.mxu0 %v660
          %v793 = vpop.f32.mrf.mxu0
          %v794 = vadd.f32 %v622, %v793
          %v795 = vpop.f32.mrf.mxu0
          %v796 = vpop.f32.mrf.mxu0
          %v797 = vadd.f32 %v622, %v796
          %v798 = vpop.f32.mrf.mxu0
          %799 = vmatprep.mubr.bf16.mxu0 0
          %800 = vmatmul.mubr.bf16.gmra.mxu0 %v661
          %v801 = vpop.f32.mrf.mxu0
          %v802 = vadd.f32 %v622, %v801
          %v803 = vpop.f32.mrf.mxu0
          %v804 = vpop.f32.mrf.mxu0
          %v805 = vadd.f32 %v622, %v804
          %v806 = vpop.f32.mrf.mxu0
          %807 = vmatprep.mubr.bf16.mxu0 0
          %808 = vmatmul.mubr.bf16.gmra.mxu0 %v662
          %v809 = vpop.f32.mrf.mxu0
          %v810 = vadd.f32 %v622, %v809
          %v811 = vpop.f32.mrf.mxu0
          %v812 = vpop.f32.mrf.mxu0
          %v813 = vadd.f32 %v622, %v812
          %v814 = vpop.f32.mrf.mxu0
          %815 = vdwg.mxu0
          %v816 = vmax.f32 %v754, 0.0
          %v817 = vmax.f32 %v757, 0.0
          %v818 = vmax.f32 %v762, 0.0
          %v819 = vmax.f32 %v765, 0.0
          %v820 = vmax.f32 %v770, 0.0
          %v821 = vmax.f32 %v773, 0.0
          %v822 = vmax.f32 %v778, 0.0
          %v823 = vmax.f32 %v781, 0.0
          %v824 = vmax.f32 %v786, 0.0
          %v825 = vmax.f32 %v789, 0.0
          %v826 = vmax.f32 %v794, 0.0
          %v827 = vmax.f32 %v797, 0.0
          %v828 = vmax.f32 %v802, 0.0
          %v829 = vmax.f32 %v805, 0.0
          %v830 = vmax.f32 %v810, 0.0
          %v831 = vmax.f32 %v813, 0.0
          %832 = vst [vmem:[#allocation4] sm:$0xff] %v816
          %833 = vst [vmem:[#allocation4 + $0x8] sm:$0xff] %v817
          %834 = vst [vmem:[#allocation4 + $0x10] sm:$0xff] %v818
          %835 = vst [vmem:[#allocation4 + $0x18] sm:$0xff] %v819
          %836 = vst [vmem:[#allocation4 + $0x20] sm:$0xff] %v820
          %837 = vst [vmem:[#allocation4 + $0x28] sm:$0xff] %v821
          %838 = vst [vmem:[#allocation4 + $0x30] sm:$0xff] %v822
          %839 = vst [vmem:[#allocation4 + $0x38] sm:$0xff] %v823
          %840 = vst [vmem:[#allocation4 + $0x40] sm:$0xff] %v824
          %841 = vst [vmem:[#allocation4 + $0x48] sm:$0xff] %v825
          %842 = vst [vmem:[#allocation4 + $0x50] sm:$0xff] %v826
          %843 = vst [vmem:[#allocation4 + $0x58] sm:$0xff] %v827
          %844 = vst [vmem:[#allocation4 + $0x60] sm:$0xff] %v828
          %845 = vst [vmem:[#allocation4 + $0x68] sm:$0xff] %v829
          %846 = vst [vmem:[#allocation4 + $0x70] sm:$0xff] %v830
          %847 = vst [vmem:[#allocation4 + $0x78] sm:$0xff] %v831
          %v848 = vpack.c.bf16 %v817, %v816
          %v849 = vpack.c.bf16 %v819, %v818
          %v850 = vpack.c.bf16 %v821, %v820
          %v851 = vpack.c.bf16 %v823, %v822
          %v852 = vpack.c.bf16 %v825, %v824
          %v853 = vpack.c.bf16 %v827, %v826
          %v854 = vpack.c.bf16 %v829, %v828
          %v855 = vpack.c.bf16 %v831, %v830
          %v864 = vunpack.c.l.b16 %v848
          %v865 = vunpack.c.h.b16 %v848
          %v866 = vunpack.c.l.b16 %v849
          %v867 = vunpack.c.h.b16 %v849
          %v868 = vunpack.c.l.b16 %v850
          %v869 = vunpack.c.h.b16 %v850
          %v870 = vunpack.c.l.b16 %v851
          %v871 = vunpack.c.h.b16 %v851
          %v872 = vunpack.c.l.b16 %v852
          %v873 = vunpack.c.h.b16 %v852
          %v874 = vunpack.c.l.b16 %v853
          %v875 = vunpack.c.h.b16 %v853
          %v876 = vunpack.c.l.b16 %v854
          %v877 = vunpack.c.h.b16 %v854
          %v878 = vunpack.c.l.b16 %v855
          %v879 = vunpack.c.h.b16 %v855
          %v880 = vpack.c.b16 %v864, %v864
          %v881 = vpack.c.b16 %v865, %v865
          %v882 = vpack.c.b16 %v866, %v866
          %v883 = vpack.c.b16 %v867, %v867
          %v884 = vpack.c.b16 %v868, %v868
          %v885 = vpack.c.b16 %v869, %v869
          %v886 = vpack.c.b16 %v870, %v870
          %v887 = vpack.c.b16 %v871, %v871
          %v888 = vpack.c.b16 %v872, %v872
          %v889 = vpack.c.b16 %v873, %v873
          %v890 = vpack.c.b16 %v874, %v874
          %v891 = vpack.c.b16 %v875, %v875
          %v892 = vpack.c.b16 %v876, %v876
          %v893 = vpack.c.b16 %v877, %v877
          %v894 = vpack.c.b16 %v878, %v878
          %v895 = vpack.c.b16 %v879, %v879
          %912 = vst [vmem:[#allocation3] sm:$0xf] %v880
          %913 = vst [vmem:[#allocation3 + $0x4] sm:$0xf] %v881
          %914 = vst [vmem:[#allocation3 + $0x8] sm:$0xf] %v882
          %915 = vst [vmem:[#allocation3 + $0xc] sm:$0xf] %v883
          %916 = vst [vmem:[#allocation3 + $0x10] sm:$0xf] %v884
          %917 = vst [vmem:[#allocation3 + $0x14] sm:$0xf] %v885
          %918 = vst [vmem:[#allocation3 + $0x18] sm:$0xf] %v886
          %919 = vst [vmem:[#allocation3 + $0x1c] sm:$0xf] %v887
          %920 = vst [vmem:[#allocation3 + $0x20] sm:$0xf] %v888
          %921 = vst [vmem:[#allocation3 + $0x24] sm:$0xf] %v889
          %922 = vst [vmem:[#allocation3 + $0x28] sm:$0xf] %v890
          %923 = vst [vmem:[#allocation3 + $0x2c] sm:$0xf] %v891
          %924 = vst [vmem:[#allocation3 + $0x30] sm:$0xf] %v892
          %925 = vst [vmem:[#allocation3 + $0x34] sm:$0xf] %v893
          %926 = vst [vmem:[#allocation3 + $0x38] sm:$0xf] %v894
          %927 = vst [vmem:[#allocation3 + $0x3c] sm:$0xf] %v895
        $region76: #{gnn_forward.1} parent=59 // pred_fallthru
          _
        %v928 = vld [vmem:[%s527] sm:$0xf]
        %v929 = vld [vmem:[%s527 + $0x4] sm:$0xf]
        %v930 = vld [vmem:[%s527 + $0x8] sm:$0xf]
        %v931 = vld [vmem:[%s527 + $0xc] sm:$0xf]
        %v932 = vld [vmem:[%s527 + $0x10] sm:$0xf]
        %v933 = vld [vmem:[%s527 + $0x14] sm:$0xf]
        %v934 = vld [vmem:[%s527 + $0x18] sm:$0xf]
        %v935 = vld [vmem:[%s527 + $0x1c] sm:$0xf]
        %v936 = vld [vmem:[%s527 + $0x20] sm:$0xf]
        %v937 = vld [vmem:[%s527 + $0x24] sm:$0xf]
        %v938 = vld [vmem:[%s527 + $0x28] sm:$0xf]
        %v939 = vld [vmem:[%s527 + $0x2c] sm:$0xf]
        %v940 = vld [vmem:[%s527 + $0x30] sm:$0xf]
        %v941 = vld [vmem:[%s527 + $0x34] sm:$0xf]
        %v942 = vld [vmem:[%s527 + $0x38] sm:$0xf]
        %v943 = vld [vmem:[%s527 + $0x3c] sm:$0xf]
        %v944 = vld [vmem:[%s527 + $0x40] sm:$0xf]
        %v945 = vld [vmem:[%s527 + $0x44] sm:$0xf]
        %v946 = vld [vmem:[%s527 + $0x48] sm:$0xf]
        %v947 = vld [vmem:[%s527 + $0x4c] sm:$0xf]
        %v948 = vld [vmem:[%s527 + $0x50] sm:$0xf]
        %v949 = vld [vmem:[%s527 + $0x54] sm:$0xf]
        %v950 = vld [vmem:[%s527 + $0x58] sm:$0xf]
        %v951 = vld [vmem:[%s527 + $0x5c] sm:$0xf]
        %v952 = vld [vmem:[%s527 + $0x60] sm:$0xf]
        %v953 = vld [vmem:[%s527 + $0x64] sm:$0xf]
        %v954 = vld [vmem:[%s527 + $0x68] sm:$0xf]
        %v955 = vld [vmem:[%s527 + $0x6c] sm:$0xf]
        %v956 = vld [vmem:[%s527 + $0x70] sm:$0xf]
        %v957 = vld [vmem:[%s527 + $0x74] sm:$0xf]
        %v958 = vld [vmem:[%s527 + $0x78] sm:$0xf]
        %v959 = vld [vmem:[%s527 + $0x7c] sm:$0xf]
        %v960 = vld [vmem:[%s438] sm:$0xf]
        %v961 = vld [vmem:[%s438 + $0x4] sm:$0xf]
        %v962 = vld [vmem:[%s438 + $0x8] sm:$0xf]
        %v963 = vld [vmem:[%s438 + $0xc] sm:$0xf]
        %v964 = vld [vmem:[%s438 + $0x10] sm:$0xf]
        %v965 = vld [vmem:[%s438 + $0x14] sm:$0xf]
        %v966 = vld [vmem:[%s438 + $0x18] sm:$0xf]
        %v967 = vld [vmem:[%s438 + $0x1c] sm:$0xf]
        %v968 = vld [vmem:[%s438 + $0x20] sm:$0xf]
        %v969 = vld [vmem:[%s438 + $0x24] sm:$0xf]
        %v970 = vld [vmem:[%s438 + $0x28] sm:$0xf]
        %v971 = vld [vmem:[%s438 + $0x2c] sm:$0xf]
        %v972 = vld [vmem:[%s438 + $0x30] sm:$0xf]
        %v973 = vld [vmem:[%s438 + $0x34] sm:$0xf]
        %v974 = vld [vmem:[%s438 + $0x38] sm:$0xf]
        %v975 = vld [vmem:[%s438 + $0x3c] sm:$0xf]
        %v976 = vld [vmem:[%s539] sm:$0x1]
        %v977 = vunpack.c.l.bf16 %v976
        %v978 = vlaneseq
        %v979 = vshrl.u32 %v978, 7
        %v980 = vsub.s32 0, %v979
        %v981 = vrot.slane %v977, %v980
        %v1014 = vunpack.c.l.b16 %v928
        %v1015 = vunpack.c.l.b16 %v929
        %v1016 = vunpack.c.l.b16 %v930
        %v1017 = vunpack.c.l.b16 %v931
        %v1018 = vunpack.c.l.b16 %v932
        %v1019 = vunpack.c.l.b16 %v933
        %v1020 = vunpack.c.l.b16 %v934
        %v1021 = vunpack.c.l.b16 %v935
        %v1022 = vunpack.c.l.b16 %v936
        %v1023 = vunpack.c.l.b16 %v937
        %v1024 = vunpack.c.l.b16 %v938
        %v1025 = vunpack.c.l.b16 %v939
        %v1026 = vunpack.c.l.b16 %v940
        %v1027 = vunpack.c.l.b16 %v941
        %v1028 = vunpack.c.l.b16 %v942
        %v1029 = vunpack.c.l.b16 %v943
        %v1030 = vunpack.c.l.b16 %v944
        %v1031 = vunpack.c.l.b16 %v945
        %v1032 = vunpack.c.l.b16 %v946
        %v1033 = vunpack.c.l.b16 %v947
        %v1034 = vunpack.c.l.b16 %v948
        %v1035 = vunpack.c.l.b16 %v949
        %v1036 = vunpack.c.l.b16 %v950
        %v1037 = vunpack.c.l.b16 %v951
        %v1038 = vunpack.c.l.b16 %v952
        %v1039 = vunpack.c.l.b16 %v953
        %v1040 = vunpack.c.l.b16 %v954
        %v1041 = vunpack.c.l.b16 %v955
        %v1042 = vunpack.c.l.b16 %v956
        %v1043 = vunpack.c.l.b16 %v957
        %v1044 = vunpack.c.l.b16 %v958
        %v1045 = vunpack.c.l.b16 %v959
        %v1046 = vpack.c.b16 %v1015, %v1014
        %v1047 = vpack.c.b16 %v1017, %v1016
        %v1048 = vpack.c.b16 %v1019, %v1018
        %v1049 = vpack.c.b16 %v1021, %v1020
        %v1050 = vpack.c.b16 %v1023, %v1022
        %v1051 = vpack.c.b16 %v1025, %v1024
        %v1052 = vpack.c.b16 %v1027, %v1026
        %v1053 = vpack.c.b16 %v1029, %v1028
        %v1054 = vpack.c.b16 %v1031, %v1030
        %v1055 = vpack.c.b16 %v1033, %v1032
        %v1056 = vpack.c.b16 %v1035, %v1034
        %v1057 = vpack.c.b16 %v1037, %v1036
        %v1058 = vpack.c.b16 %v1039, %v1038
        %v1059 = vpack.c.b16 %v1041, %v1040
        %v1060 = vpack.c.b16 %v1043, %v1042
        %v1061 = vpack.c.b16 %v1045, %v1044
        %v1094 = vunpack.c.l.b16 %v960
        %v1095 = vunpack.c.l.b16 %v961
        %v1096 = vunpack.c.l.b16 %v962
        %v1097 = vunpack.c.l.b16 %v963
        %v1098 = vunpack.c.l.b16 %v964
        %v1099 = vunpack.c.l.b16 %v965
        %v1100 = vunpack.c.l.b16 %v966
        %v1101 = vunpack.c.l.b16 %v967
        %v1102 = vunpack.c.l.b16 %v968
        %v1103 = vunpack.c.l.b16 %v969
        %v1104 = vunpack.c.l.b16 %v970
        %v1105 = vunpack.c.l.b16 %v971
        %v1106 = vunpack.c.l.b16 %v972
        %v1107 = vunpack.c.l.b16 %v973
        %v1108 = vunpack.c.l.b16 %v974
        %v1109 = vunpack.c.l.b16 %v975
        %v1110 = vpack.c.b16 %v1095, %v1094
        %v1111 = vpack.c.b16 %v1097, %v1096
        %v1112 = vpack.c.b16 %v1099, %v1098
        %v1113 = vpack.c.b16 %v1101, %v1100
        %v1114 = vpack.c.b16 %v1103, %v1102
        %v1115 = vpack.c.b16 %v1105, %v1104
        %v1116 = vpack.c.b16 %v1107, %v1106
        %v1117 = vpack.c.b16 %v1109, %v1108
        %1126 = vmatprep.subr.bf16.mxu0 0
        %1127 = vmatpush1.bf16.msra.mxu0 %v1117
        %1128 = vmatprep.subr.bf16.mxu0 0
        %1129 = vmatpush1.bf16.msra.mxu0 %v1116
        %1130 = vmatprep.subr.bf16.mxu0 0
        %1131 = vmatpush1.bf16.msra.mxu0 %v1115
        %1132 = vmatprep.subr.bf16.mxu0 0
        %1133 = vmatpush1.bf16.msra.mxu0 %v1114
        %1134 = vmatprep.subr.bf16.mxu0 0
        %1135 = vmatpush1.bf16.msra.mxu0 %v1113
        %1136 = vmatprep.subr.bf16.mxu0 0
        %1137 = vmatpush1.bf16.msra.mxu0 %v1112
        %1138 = vmatprep.subr.bf16.mxu0 0
        %1139 = vmatpush1.bf16.msra.mxu0 %v1111
        %1140 = vmatprep.subr.bf16.mxu0 0
        %1141 = vmatpush1.bf16.msra.mxu0 %v1110
        %1142 = vmatprep.subr.bf16.mxu0 0
        %1143 = vmatpush2.bf16.msra.mxu0 0
        %1144 = vmatprep.subr.bf16.mxu0 0
        %1145 = vmatpush2.bf16.msra.mxu0 0
        %1146 = vmatprep.subr.bf16.mxu0 0
        %1147 = vmatpush2.bf16.msra.mxu0 0
        %1148 = vmatprep.subr.bf16.mxu0 0
        %1149 = vmatpush2.bf16.msra.mxu0 0
        %1150 = vmatprep.subr.bf16.mxu0 0
        %1151 = vmatpush2.bf16.msra.mxu0 0
        %1152 = vmatprep.subr.bf16.mxu0 0
        %1153 = vmatpush2.bf16.msra.mxu0 0
        %1154 = vmatprep.subr.bf16.mxu0 0
        %1155 = vmatpush2.bf16.msra.mxu0 0
        %1156 = vmatprep.subr.bf16.mxu0 0
        %1157 = vmatpush2.bf16.msra.mxu0 0
        %1158 = vmatprep.mubr.bf16.mxu0 0
        %1159 = vmatmul.mubr.bf16.gmra.mxu0 %v1046
        %v1160 = vpop.f32.mrf.mxu0
        %v1161 = vadd.f32 %v981, %v1160
        %v1162 = vpop.f32.mrf.mxu0
        %v1163 = vpop.f32.mrf.mxu0
        %v1164 = vadd.f32 %v981, %v1163
        %v1165 = vpop.f32.mrf.mxu0
        %1166 = vmatprep.mubr.bf16.mxu0 0
        %1167 = vmatmul.mubr.bf16.gmra.mxu0 %v1047
        %v1168 = vpop.f32.mrf.mxu0
        %v1169 = vadd.f32 %v981, %v1168
        %v1170 = vpop.f32.mrf.mxu0
        %v1171 = vpop.f32.mrf.mxu0
        %v1172 = vadd.f32 %v981, %v1171
        %v1173 = vpop.f32.mrf.mxu0
        %1174 = vmatprep.mubr.bf16.mxu0 0
        %1175 = vmatmul.mubr.bf16.gmra.mxu0 %v1048
        %v1176 = vpop.f32.mrf.mxu0
        %v1177 = vadd.f32 %v981, %v1176
        %v1178 = vpop.f32.mrf.mxu0
        %v1179 = vpop.f32.mrf.mxu0
        %v1180 = vadd.f32 %v981, %v1179
        %v1181 = vpop.f32.mrf.mxu0
        %1182 = vmatprep.mubr.bf16.mxu0 0
        %1183 = vmatmul.mubr.bf16.gmra.mxu0 %v1049
        %v1184 = vpop.f32.mrf.mxu0
        %v1185 = vadd.f32 %v981, %v1184
        %v1186 = vpop.f32.mrf.mxu0
        %v1187 = vpop.f32.mrf.mxu0
        %v1188 = vadd.f32 %v981, %v1187
        %v1189 = vpop.f32.mrf.mxu0
        %1190 = vmatprep.mubr.bf16.mxu0 0
        %1191 = vmatmul.mubr.bf16.gmra.mxu0 %v1050
        %v1192 = vpop.f32.mrf.mxu0
        %v1193 = vadd.f32 %v981, %v1192
        %v1194 = vpop.f32.mrf.mxu0
        %v1195 = vpop.f32.mrf.mxu0
        %v1196 = vadd.f32 %v981, %v1195
        %v1197 = vpop.f32.mrf.mxu0
        %1198 = vmatprep.mubr.bf16.mxu0 0
        %1199 = vmatmul.mubr.bf16.gmra.mxu0 %v1051
        %v1200 = vpop.f32.mrf.mxu0
        %v1201 = vadd.f32 %v981, %v1200
        %v1202 = vpop.f32.mrf.mxu0
        %v1203 = vpop.f32.mrf.mxu0
        %v1204 = vadd.f32 %v981, %v1203
        %v1205 = vpop.f32.mrf.mxu0
        %1206 = vmatprep.mubr.bf16.mxu0 0
        %1207 = vmatmul.mubr.bf16.gmra.mxu0 %v1052
        %v1208 = vpop.f32.mrf.mxu0
        %v1209 = vadd.f32 %v981, %v1208
        %v1210 = vpop.f32.mrf.mxu0
        %v1211 = vpop.f32.mrf.mxu0
        %v1212 = vadd.f32 %v981, %v1211
        %v1213 = vpop.f32.mrf.mxu0
        %1214 = vmatprep.mubr.bf16.mxu0 0
        %1215 = vmatmul.mubr.bf16.gmra.mxu0 %v1053
        %v1216 = vpop.f32.mrf.mxu0
        %v1217 = vadd.f32 %v981, %v1216
        %v1218 = vpop.f32.mrf.mxu0
        %v1219 = vpop.f32.mrf.mxu0
        %v1220 = vadd.f32 %v981, %v1219
        %v1221 = vpop.f32.mrf.mxu0
        %1222 = vmatprep.mubr.bf16.mxu0 0
        %1223 = vmatmul.mubr.bf16.gmra.mxu0 %v1054
        %v1224 = vpop.f32.mrf.mxu0
        %v1225 = vadd.f32 %v981, %v1224
        %v1226 = vpop.f32.mrf.mxu0
        %v1227 = vpop.f32.mrf.mxu0
        %v1228 = vadd.f32 %v981, %v1227
        %v1229 = vpop.f32.mrf.mxu0
        %1230 = vmatprep.mubr.bf16.mxu0 0
        %1231 = vmatmul.mubr.bf16.gmra.mxu0 %v1055
        %v1232 = vpop.f32.mrf.mxu0
        %v1233 = vadd.f32 %v981, %v1232
        %v1234 = vpop.f32.mrf.mxu0
        %v1235 = vpop.f32.mrf.mxu0
        %v1236 = vadd.f32 %v981, %v1235
        %v1237 = vpop.f32.mrf.mxu0
        %1238 = vmatprep.mubr.bf16.mxu0 0
        %1239 = vmatmul.mubr.bf16.gmra.mxu0 %v1056
        %v1240 = vpop.f32.mrf.mxu0
        %v1241 = vadd.f32 %v981, %v1240
        %v1242 = vpop.f32.mrf.mxu0
        %v1243 = vpop.f32.mrf.mxu0
        %v1244 = vadd.f32 %v981, %v1243
        %v1245 = vpop.f32.mrf.mxu0
        %1246 = vmatprep.mubr.bf16.mxu0 0
        %1247 = vmatmul.mubr.bf16.gmra.mxu0 %v1057
        %v1248 = vpop.f32.mrf.mxu0
        %v1249 = vadd.f32 %v981, %v1248
        %v1250 = vpop.f32.mrf.mxu0
        %v1251 = vpop.f32.mrf.mxu0
        %v1252 = vadd.f32 %v981, %v1251
        %v1253 = vpop.f32.mrf.mxu0
        %1254 = vmatprep.mubr.bf16.mxu0 0
        %1255 = vmatmul.mubr.bf16.gmra.mxu0 %v1058
        %v1256 = vpop.f32.mrf.mxu0
        %v1257 = vadd.f32 %v981, %v1256
        %v1258 = vpop.f32.mrf.mxu0
        %v1259 = vpop.f32.mrf.mxu0
        %v1260 = vadd.f32 %v981, %v1259
        %v1261 = vpop.f32.mrf.mxu0
        %1262 = vmatprep.mubr.bf16.mxu0 0
        %1263 = vmatmul.mubr.bf16.gmra.mxu0 %v1059
        %v1264 = vpop.f32.mrf.mxu0
        %v1265 = vadd.f32 %v981, %v1264
        %v1266 = vpop.f32.mrf.mxu0
        %v1267 = vpop.f32.mrf.mxu0
        %v1268 = vadd.f32 %v981, %v1267
        %v1269 = vpop.f32.mrf.mxu0
        %1270 = vmatprep.mubr.bf16.mxu0 0
        %1271 = vmatmul.mubr.bf16.gmra.mxu0 %v1060
        %v1272 = vpop.f32.mrf.mxu0
        %v1273 = vadd.f32 %v981, %v1272
        %v1274 = vpop.f32.mrf.mxu0
        %v1275 = vpop.f32.mrf.mxu0
        %v1276 = vadd.f32 %v981, %v1275
        %v1277 = vpop.f32.mrf.mxu0
        %1278 = vmatprep.mubr.bf16.mxu0 0
        %1279 = vmatmul.mubr.bf16.gmra.mxu0 %v1061
        %v1280 = vpop.f32.mrf.mxu0
        %v1281 = vadd.f32 %v981, %v1280
        %v1282 = vpop.f32.mrf.mxu0
        %v1283 = vpop.f32.mrf.mxu0
        %v1284 = vadd.f32 %v981, %v1283
        %v1285 = vpop.f32.mrf.mxu0
        %1286 = vdwg.mxu0
        %v1287 = vmax.f32 %v1161, 0.0
        %v1288 = vmax.f32 %v1164, 0.0
        %v1289 = vmax.f32 %v1169, 0.0
        %v1290 = vmax.f32 %v1172, 0.0
        %v1291 = vmax.f32 %v1177, 0.0
        %v1292 = vmax.f32 %v1180, 0.0
        %v1293 = vmax.f32 %v1185, 0.0
        %v1294 = vmax.f32 %v1188, 0.0
        %v1295 = vmax.f32 %v1193, 0.0
        %v1296 = vmax.f32 %v1196, 0.0
        %v1297 = vmax.f32 %v1201, 0.0
        %v1298 = vmax.f32 %v1204, 0.0
        %v1299 = vmax.f32 %v1209, 0.0
        %v1300 = vmax.f32 %v1212, 0.0
        %v1301 = vmax.f32 %v1217, 0.0
        %v1302 = vmax.f32 %v1220, 0.0
        %v1303 = vmax.f32 %v1225, 0.0
        %v1304 = vmax.f32 %v1228, 0.0
        %v1305 = vmax.f32 %v1233, 0.0
        %v1306 = vmax.f32 %v1236, 0.0
        %v1307 = vmax.f32 %v1241, 0.0
        %v1308 = vmax.f32 %v1244, 0.0
        %v1309 = vmax.f32 %v1249, 0.0
        %v1310 = vmax.f32 %v1252, 0.0
        %v1311 = vmax.f32 %v1257, 0.0
        %v1312 = vmax.f32 %v1260, 0.0
        %v1313 = vmax.f32 %v1265, 0.0
        %v1314 = vmax.f32 %v1268, 0.0
        %v1315 = vmax.f32 %v1273, 0.0
        %v1316 = vmax.f32 %v1276, 0.0
        %v1317 = vmax.f32 %v1281, 0.0
        %v1318 = vmax.f32 %v1284, 0.0
        %v1319 = vpack.c.bf16 %v1288, %v1287
        %v1320 = vpack.c.bf16 %v1290, %v1289
        %v1321 = vpack.c.bf16 %v1292, %v1291
        %v1322 = vpack.c.bf16 %v1294, %v1293
        %v1323 = vpack.c.bf16 %v1296, %v1295
        %v1324 = vpack.c.bf16 %v1298, %v1297
        %v1325 = vpack.c.bf16 %v1300, %v1299
        %v1326 = vpack.c.bf16 %v1302, %v1301
        %v1327 = vpack.c.bf16 %v1304, %v1303
        %v1328 = vpack.c.bf16 %v1306, %v1305
        %v1329 = vpack.c.bf16 %v1308, %v1307
        %v1330 = vpack.c.bf16 %v1310, %v1309
        %v1331 = vpack.c.bf16 %v1312, %v1311
        %v1332 = vpack.c.bf16 %v1314, %v1313
        %v1333 = vpack.c.bf16 %v1316, %v1315
        %v1334 = vpack.c.bf16 %v1318, %v1317
        %v1335 = vld [vmem:[%s447] sm:$0xf]
        %v1336 = vld [vmem:[%s447 + $0x4] sm:$0xf]
        %v1337 = vld [vmem:[%s447 + $0x8] sm:$0xf]
        %v1338 = vld [vmem:[%s447 + $0xc] sm:$0xf]
        %v1339 = vld [vmem:[%s447 + $0x10] sm:$0xf]
        %v1340 = vld [vmem:[%s447 + $0x14] sm:$0xf]
        %v1341 = vld [vmem:[%s447 + $0x18] sm:$0xf]
        %v1342 = vld [vmem:[%s447 + $0x1c] sm:$0xf]
        %v1343 = vld [vmem:[%s447 + $0x20] sm:$0xf]
        %v1344 = vld [vmem:[%s447 + $0x24] sm:$0xf]
        %v1345 = vld [vmem:[%s447 + $0x28] sm:$0xf]
        %v1346 = vld [vmem:[%s447 + $0x2c] sm:$0xf]
        %v1347 = vld [vmem:[%s447 + $0x30] sm:$0xf]
        %v1348 = vld [vmem:[%s447 + $0x34] sm:$0xf]
        %v1349 = vld [vmem:[%s447 + $0x38] sm:$0xf]
        %v1350 = vld [vmem:[%s447 + $0x3c] sm:$0xf]
        %v1351 = vld [vmem:[%s542] sm:$0x1]
        %v1352 = vunpack.c.l.bf16 %v1351
        %v1353 = vlaneseq
        %v1354 = vshrl.u32 %v1353, 7
        %v1355 = vsub.s32 0, %v1354
        %v1356 = vrot.slane %v1352, %v1355
        %v1373 = vunpack.c.l.b16 %v1335
        %v1374 = vunpack.c.l.b16 %v1336
        %v1375 = vunpack.c.l.b16 %v1337
        %v1376 = vunpack.c.l.b16 %v1338
        %v1377 = vunpack.c.l.b16 %v1339
        %v1378 = vunpack.c.l.b16 %v1340
        %v1379 = vunpack.c.l.b16 %v1341
        %v1380 = vunpack.c.l.b16 %v1342
        %v1381 = vunpack.c.l.b16 %v1343
        %v1382 = vunpack.c.l.b16 %v1344
        %v1383 = vunpack.c.l.b16 %v1345
        %v1384 = vunpack.c.l.b16 %v1346
        %v1385 = vunpack.c.l.b16 %v1347
        %v1386 = vunpack.c.l.b16 %v1348
        %v1387 = vunpack.c.l.b16 %v1349
        %v1388 = vunpack.c.l.b16 %v1350
        %v1389 = vpack.c.b16 %v1374, %v1373
        %v1390 = vpack.c.b16 %v1376, %v1375
        %v1391 = vpack.c.b16 %v1378, %v1377
        %v1392 = vpack.c.b16 %v1380, %v1379
        %v1393 = vpack.c.b16 %v1382, %v1381
        %v1394 = vpack.c.b16 %v1384, %v1383
        %v1395 = vpack.c.b16 %v1386, %v1385
        %v1396 = vpack.c.b16 %v1388, %v1387
        %1405 = vmatprep.subr.bf16.mxu0 0
        %1406 = vmatpush1.bf16.msra.mxu0 %v1396
        %1407 = vmatprep.subr.bf16.mxu0 0
        %1408 = vmatpush1.bf16.msra.mxu0 %v1395
        %1409 = vmatprep.subr.bf16.mxu0 0
        %1410 = vmatpush1.bf16.msra.mxu0 %v1394
        %1411 = vmatprep.subr.bf16.mxu0 0
        %1412 = vmatpush1.bf16.msra.mxu0 %v1393
        %1413 = vmatprep.subr.bf16.mxu0 0
        %1414 = vmatpush1.bf16.msra.mxu0 %v1392
        %1415 = vmatprep.subr.bf16.mxu0 0
        %1416 = vmatpush1.bf16.msra.mxu0 %v1391
        %1417 = vmatprep.subr.bf16.mxu0 0
        %1418 = vmatpush1.bf16.msra.mxu0 %v1390
        %1419 = vmatprep.subr.bf16.mxu0 0
        %1420 = vmatpush1.bf16.msra.mxu0 %v1389
        %1421 = vmatprep.subr.bf16.mxu0 0
        %1422 = vmatpush2.bf16.msra.mxu0 0
        %1423 = vmatprep.subr.bf16.mxu0 0
        %1424 = vmatpush2.bf16.msra.mxu0 0
        %1425 = vmatprep.subr.bf16.mxu0 0
        %1426 = vmatpush2.bf16.msra.mxu0 0
        %1427 = vmatprep.subr.bf16.mxu0 0
        %1428 = vmatpush2.bf16.msra.mxu0 0
        %1429 = vmatprep.subr.bf16.mxu0 0
        %1430 = vmatpush2.bf16.msra.mxu0 0
        %1431 = vmatprep.subr.bf16.mxu0 0
        %1432 = vmatpush2.bf16.msra.mxu0 0
        %1433 = vmatprep.subr.bf16.mxu0 0
        %1434 = vmatpush2.bf16.msra.mxu0 0
        %1435 = vmatprep.subr.bf16.mxu0 0
        %1436 = vmatpush2.bf16.msra.mxu0 0
        %1437 = vmatprep.mubr.bf16.mxu0 0
        %1438 = vmatmul.mubr.bf16.gmra.mxu0 %v1319
        %v1439 = vpop.f32.mrf.mxu0
        %v1440 = vadd.f32 %v1356, %v1439
        %v1441 = vpop.f32.mrf.mxu0
        %v1442 = vpop.f32.mrf.mxu0
        %v1443 = vadd.f32 %v1356, %v1442
        %v1444 = vpop.f32.mrf.mxu0
        %1445 = vmatprep.mubr.bf16.mxu0 0
        %1446 = vmatmul.mubr.bf16.gmra.mxu0 %v1320
        %v1447 = vpop.f32.mrf.mxu0
        %v1448 = vadd.f32 %v1356, %v1447
        %v1449 = vpop.f32.mrf.mxu0
        %v1450 = vpop.f32.mrf.mxu0
        %v1451 = vadd.f32 %v1356, %v1450
        %v1452 = vpop.f32.mrf.mxu0
        %1453 = vmatprep.mubr.bf16.mxu0 0
        %1454 = vmatmul.mubr.bf16.gmra.mxu0 %v1321
        %v1455 = vpop.f32.mrf.mxu0
        %v1456 = vadd.f32 %v1356, %v1455
        %v1457 = vpop.f32.mrf.mxu0
        %v1458 = vpop.f32.mrf.mxu0
        %v1459 = vadd.f32 %v1356, %v1458
        %v1460 = vpop.f32.mrf.mxu0
        %1461 = vmatprep.mubr.bf16.mxu0 0
        %1462 = vmatmul.mubr.bf16.gmra.mxu0 %v1322
        %v1463 = vpop.f32.mrf.mxu0
        %v1464 = vadd.f32 %v1356, %v1463
        %v1465 = vpop.f32.mrf.mxu0
        %v1466 = vpop.f32.mrf.mxu0
        %v1467 = vadd.f32 %v1356, %v1466
        %v1468 = vpop.f32.mrf.mxu0
        %1469 = vmatprep.mubr.bf16.mxu0 0
        %1470 = vmatmul.mubr.bf16.gmra.mxu0 %v1323
        %v1471 = vpop.f32.mrf.mxu0
        %v1472 = vadd.f32 %v1356, %v1471
        %v1473 = vpop.f32.mrf.mxu0
        %v1474 = vpop.f32.mrf.mxu0
        %v1475 = vadd.f32 %v1356, %v1474
        %v1476 = vpop.f32.mrf.mxu0
        %1477 = vmatprep.mubr.bf16.mxu0 0
        %1478 = vmatmul.mubr.bf16.gmra.mxu0 %v1324
        %v1479 = vpop.f32.mrf.mxu0
        %v1480 = vadd.f32 %v1356, %v1479
        %v1481 = vpop.f32.mrf.mxu0
        %v1482 = vpop.f32.mrf.mxu0
        %v1483 = vadd.f32 %v1356, %v1482
        %v1484 = vpop.f32.mrf.mxu0
        %1485 = vmatprep.mubr.bf16.mxu0 0
        %1486 = vmatmul.mubr.bf16.gmra.mxu0 %v1325
        %v1487 = vpop.f32.mrf.mxu0
        %v1488 = vadd.f32 %v1356, %v1487
        %v1489 = vpop.f32.mrf.mxu0
        %v1490 = vpop.f32.mrf.mxu0
        %v1491 = vadd.f32 %v1356, %v1490
        %v1492 = vpop.f32.mrf.mxu0
        %1493 = vmatprep.mubr.bf16.mxu0 0
        %1494 = vmatmul.mubr.bf16.gmra.mxu0 %v1326
        %v1495 = vpop.f32.mrf.mxu0
        %v1496 = vadd.f32 %v1356, %v1495
        %v1497 = vpop.f32.mrf.mxu0
        %v1498 = vpop.f32.mrf.mxu0
        %v1499 = vadd.f32 %v1356, %v1498
        %v1500 = vpop.f32.mrf.mxu0
        %1501 = vmatprep.mubr.bf16.mxu0 0
        %1502 = vmatmul.mubr.bf16.gmra.mxu0 %v1327
        %v1503 = vpop.f32.mrf.mxu0
        %v1504 = vadd.f32 %v1356, %v1503
        %v1505 = vpop.f32.mrf.mxu0
        %v1506 = vpop.f32.mrf.mxu0
        %v1507 = vadd.f32 %v1356, %v1506
        %v1508 = vpop.f32.mrf.mxu0
        %1509 = vmatprep.mubr.bf16.mxu0 0
        %1510 = vmatmul.mubr.bf16.gmra.mxu0 %v1328
        %v1511 = vpop.f32.mrf.mxu0
        %v1512 = vadd.f32 %v1356, %v1511
        %v1513 = vpop.f32.mrf.mxu0
        %v1514 = vpop.f32.mrf.mxu0
        %v1515 = vadd.f32 %v1356, %v1514
        %v1516 = vpop.f32.mrf.mxu0
        %1517 = vmatprep.mubr.bf16.mxu0 0
        %1518 = vmatmul.mubr.bf16.gmra.mxu0 %v1329
        %v1519 = vpop.f32.mrf.mxu0
        %v1520 = vadd.f32 %v1356, %v1519
        %v1521 = vpop.f32.mrf.mxu0
        %v1522 = vpop.f32.mrf.mxu0
        %v1523 = vadd.f32 %v1356, %v1522
        %v1524 = vpop.f32.mrf.mxu0
        %1525 = vmatprep.mubr.bf16.mxu0 0
        %1526 = vmatmul.mubr.bf16.gmra.mxu0 %v1330
        %v1527 = vpop.f32.mrf.mxu0
        %v1528 = vadd.f32 %v1356, %v1527
        %v1529 = vpop.f32.mrf.mxu0
        %v1530 = vpop.f32.mrf.mxu0
        %v1531 = vadd.f32 %v1356, %v1530
        %v1532 = vpop.f32.mrf.mxu0
        %1533 = vmatprep.mubr.bf16.mxu0 0
        %1534 = vmatmul.mubr.bf16.gmra.mxu0 %v1331
        %v1535 = vpop.f32.mrf.mxu0
        %v1536 = vadd.f32 %v1356, %v1535
        %v1537 = vpop.f32.mrf.mxu0
        %v1538 = vpop.f32.mrf.mxu0
        %v1539 = vadd.f32 %v1356, %v1538
        %v1540 = vpop.f32.mrf.mxu0
        %1541 = vmatprep.mubr.bf16.mxu0 0
        %1542 = vmatmul.mubr.bf16.gmra.mxu0 %v1332
        %v1543 = vpop.f32.mrf.mxu0
        %v1544 = vadd.f32 %v1356, %v1543
        %v1545 = vpop.f32.mrf.mxu0
        %v1546 = vpop.f32.mrf.mxu0
        %v1547 = vadd.f32 %v1356, %v1546
        %v1548 = vpop.f32.mrf.mxu0
        %1549 = vmatprep.mubr.bf16.mxu0 0
        %1550 = vmatmul.mubr.bf16.gmra.mxu0 %v1333
        %v1551 = vpop.f32.mrf.mxu0
        %v1552 = vadd.f32 %v1356, %v1551
        %v1553 = vpop.f32.mrf.mxu0
        %v1554 = vpop.f32.mrf.mxu0
        %v1555 = vadd.f32 %v1356, %v1554
        %v1556 = vpop.f32.mrf.mxu0
        %1557 = vmatprep.mubr.bf16.mxu0 0
        %1558 = vmatmul.mubr.bf16.gmra.mxu0 %v1334
        %v1559 = vpop.f32.mrf.mxu0
        %v1560 = vadd.f32 %v1356, %v1559
        %v1561 = vpop.f32.mrf.mxu0
        %v1562 = vpop.f32.mrf.mxu0
        %v1563 = vadd.f32 %v1356, %v1562
        %v1564 = vpop.f32.mrf.mxu0
        %1565 = vdwg.mxu0
        %v1566 = vld [vmem:[%s516] sm:$0xff]
        %v1567 = vld [vmem:[%s516 + $0x8] sm:$0xff]
        %v1568 = vld [vmem:[%s516 + $0x10] sm:$0xff]
        %v1569 = vld [vmem:[%s516 + $0x18] sm:$0xff]
        %v1570 = vld [vmem:[%s516 + $0x20] sm:$0xff]
        %v1571 = vld [vmem:[%s516 + $0x28] sm:$0xff]
        %v1572 = vld [vmem:[%s516 + $0x30] sm:$0xff]
        %v1573 = vld [vmem:[%s516 + $0x38] sm:$0xff]
        %v1574 = vld [vmem:[%s516 + $0x40] sm:$0xff]
        %v1575 = vld [vmem:[%s516 + $0x48] sm:$0xff]
        %v1576 = vld [vmem:[%s516 + $0x50] sm:$0xff]
        %v1577 = vld [vmem:[%s516 + $0x58] sm:$0xff]
        %v1578 = vld [vmem:[%s516 + $0x60] sm:$0xff]
        %v1579 = vld [vmem:[%s516 + $0x68] sm:$0xff]
        %v1580 = vld [vmem:[%s516 + $0x70] sm:$0xff]
        %v1581 = vld [vmem:[%s516 + $0x78] sm:$0xff]
        %v1582 = vld [vmem:[%s516 + $0x80] sm:$0xff]
        %v1583 = vld [vmem:[%s516 + $0x88] sm:$0xff]
        %v1584 = vld [vmem:[%s516 + $0x90] sm:$0xff]
        %v1585 = vld [vmem:[%s516 + $0x98] sm:$0xff]
        %v1586 = vld [vmem:[%s516 + $0xa0] sm:$0xff]
        %v1587 = vld [vmem:[%s516 + $0xa8] sm:$0xff]
        %v1588 = vld [vmem:[%s516 + $0xb0] sm:$0xff]
        %v1589 = vld [vmem:[%s516 + $0xb8] sm:$0xff]
        %v1590 = vld [vmem:[%s516 + $0xc0] sm:$0xff]
        %v1591 = vld [vmem:[%s516 + $0xc8] sm:$0xff]
        %v1592 = vld [vmem:[%s516 + $0xd0] sm:$0xff]
        %v1593 = vld [vmem:[%s516 + $0xd8] sm:$0xff]
        %v1594 = vld [vmem:[%s516 + $0xe0] sm:$0xff]
        %v1595 = vld [vmem:[%s516 + $0xe8] sm:$0xff]
        %v1596 = vld [vmem:[%s516 + $0xf0] sm:$0xff]
        %v1597 = vld [vmem:[%s516 + $0xf8] sm:$0xff]
        %v1598 = vlaneseq
        %v1599 = vand.u32 %v1598, 127
        %1600 = vset.pattern.permute.xlu0 0
        %1601 = vperm.xlu0 %1600, %v1566
        %v1602 = vpop.permute.xlu0 %1601
        %1603 = vset.pattern.permute.xlu0 0
        %1604 = vperm.xlu0 %1603, %v1567
        %v1605 = vpop.permute.xlu0 %1604
        %1606 = vset.pattern.permute.xlu0 0
        %1607 = vperm.xlu0 %1606, %v1568
        %v1608 = vpop.permute.xlu0 %1607
        %1609 = vset.pattern.permute.xlu0 0
        %1610 = vperm.xlu0 %1609, %v1569
        %v1611 = vpop.permute.xlu0 %1610
        %1612 = vset.pattern.permute.xlu0 0
        %1613 = vperm.xlu0 %1612, %v1570
        %v1614 = vpop.permute.xlu0 %1613
        %1615 = vset.pattern.permute.xlu0 0
        %1616 = vperm.xlu0 %1615, %v1571
        %v1617 = vpop.permute.xlu0 %1616
        %1618 = vset.pattern.permute.xlu0 0
        %1619 = vperm.xlu0 %1618, %v1572
        %v1620 = vpop.permute.xlu0 %1619
        %1621 = vset.pattern.permute.xlu0 0
        %1622 = vperm.xlu0 %1621, %v1573
        %v1623 = vpop.permute.xlu0 %1622
        %1624 = vset.pattern.permute.xlu0 0
        %1625 = vperm.xlu0 %1624, %v1574
        %v1626 = vpop.permute.xlu0 %1625
        %1627 = vset.pattern.permute.xlu0 0
        %1628 = vperm.xlu0 %1627, %v1575
        %v1629 = vpop.permute.xlu0 %1628
        %1630 = vset.pattern.permute.xlu0 0
        %1631 = vperm.xlu0 %1630, %v1576
        %v1632 = vpop.permute.xlu0 %1631
        %1633 = vset.pattern.permute.xlu0 0
        %1634 = vperm.xlu0 %1633, %v1577
        %v1635 = vpop.permute.xlu0 %1634
        %1636 = vset.pattern.permute.xlu0 0
        %1637 = vperm.xlu0 %1636, %v1578
        %v1638 = vpop.permute.xlu0 %1637
        %1639 = vset.pattern.permute.xlu0 0
        %1640 = vperm.xlu0 %1639, %v1579
        %v1641 = vpop.permute.xlu0 %1640
        %1642 = vset.pattern.permute.xlu0 0
        %1643 = vperm.xlu0 %1642, %v1580
        %v1644 = vpop.permute.xlu0 %1643
        %1645 = vset.pattern.permute.xlu0 0
        %1646 = vperm.xlu0 %1645, %v1581
        %v1647 = vpop.permute.xlu0 %1646
        %1648 = vset.pattern.permute.xlu0 0
        %1649 = vperm.xlu0 %1648, %v1582
        %v1650 = vpop.permute.xlu0 %1649
        %1651 = vset.pattern.permute.xlu0 0
        %1652 = vperm.xlu0 %1651, %v1583
        %v1653 = vpop.permute.xlu0 %1652
        %1654 = vset.pattern.permute.xlu0 0
        %1655 = vperm.xlu0 %1654, %v1584
        %v1656 = vpop.permute.xlu0 %1655
        %1657 = vset.pattern.permute.xlu0 0
        %1658 = vperm.xlu0 %1657, %v1585
        %v1659 = vpop.permute.xlu0 %1658
        %1660 = vset.pattern.permute.xlu0 0
        %1661 = vperm.xlu0 %1660, %v1586
        %v1662 = vpop.permute.xlu0 %1661
        %1663 = vset.pattern.permute.xlu0 0
        %1664 = vperm.xlu0 %1663, %v1587
        %v1665 = vpop.permute.xlu0 %1664
        %1666 = vset.pattern.permute.xlu0 0
        %1667 = vperm.xlu0 %1666, %v1588
        %v1668 = vpop.permute.xlu0 %1667
        %1669 = vset.pattern.permute.xlu0 0
        %1670 = vperm.xlu0 %1669, %v1589
        %v1671 = vpop.permute.xlu0 %1670
        %1672 = vset.pattern.permute.xlu0 0
        %1673 = vperm.xlu0 %1672, %v1590
        %v1674 = vpop.permute.xlu0 %1673
        %1675 = vset.pattern.permute.xlu0 0
        %1676 = vperm.xlu0 %1675, %v1591
        %v1677 = vpop.permute.xlu0 %1676
        %1678 = vset.pattern.permute.xlu0 0
        %1679 = vperm.xlu0 %1678, %v1592
        %v1680 = vpop.permute.xlu0 %1679
        %1681 = vset.pattern.permute.xlu0 0
        %1682 = vperm.xlu0 %1681, %v1593
        %v1683 = vpop.permute.xlu0 %1682
        %1684 = vset.pattern.permute.xlu0 0
        %1685 = vperm.xlu0 %1684, %v1594
        %v1686 = vpop.permute.xlu0 %1685
        %1687 = vset.pattern.permute.xlu0 0
        %1688 = vperm.xlu0 %1687, %v1595
        %v1689 = vpop.permute.xlu0 %1688
        %1690 = vset.pattern.permute.xlu0 0
        %1691 = vperm.xlu0 %1690, %v1596
        %v1692 = vpop.permute.xlu0 %1691
        %1693 = vset.pattern.permute.xlu0 0
        %1694 = vperm.xlu0 %1693, %v1597
        %v1695 = vpop.permute.xlu0 %1694
        %vm1696 = vcmp.eq.s32.totalorder %v1602, %v1599
        %vm1697 = vcmp.eq.s32.totalorder %v1605, %v1599
        %vm1698 = vcmp.eq.s32.totalorder %v1608, %v1599
        %vm1699 = vcmp.eq.s32.totalorder %v1611, %v1599
        %vm1700 = vcmp.eq.s32.totalorder %v1614, %v1599
        %vm1701 = vcmp.eq.s32.totalorder %v1617, %v1599
        %vm1702 = vcmp.eq.s32.totalorder %v1620, %v1599
        %vm1703 = vcmp.eq.s32.totalorder %v1623, %v1599
        %vm1704 = vcmp.eq.s32.totalorder %v1626, %v1599
        %vm1705 = vcmp.eq.s32.totalorder %v1629, %v1599
        %vm1706 = vcmp.eq.s32.totalorder %v1632, %v1599
        %vm1707 = vcmp.eq.s32.totalorder %v1635, %v1599
        %vm1708 = vcmp.eq.s32.totalorder %v1638, %v1599
        %vm1709 = vcmp.eq.s32.totalorder %v1641, %v1599
        %vm1710 = vcmp.eq.s32.totalorder %v1644, %v1599
        %vm1711 = vcmp.eq.s32.totalorder %v1647, %v1599
        %vm1712 = vcmp.eq.s32.totalorder %v1650, %v1599
        %vm1713 = vcmp.eq.s32.totalorder %v1653, %v1599
        %vm1714 = vcmp.eq.s32.totalorder %v1656, %v1599
        %vm1715 = vcmp.eq.s32.totalorder %v1659, %v1599
        %vm1716 = vcmp.eq.s32.totalorder %v1662, %v1599
        %vm1717 = vcmp.eq.s32.totalorder %v1665, %v1599
        %vm1718 = vcmp.eq.s32.totalorder %v1668, %v1599
        %vm1719 = vcmp.eq.s32.totalorder %v1671, %v1599
        %vm1720 = vcmp.eq.s32.totalorder %v1674, %v1599
        %vm1721 = vcmp.eq.s32.totalorder %v1677, %v1599
        %vm1722 = vcmp.eq.s32.totalorder %v1680, %v1599
        %vm1723 = vcmp.eq.s32.totalorder %v1683, %v1599
        %vm1724 = vcmp.eq.s32.totalorder %v1686, %v1599
        %vm1725 = vcmp.eq.s32.totalorder %v1689, %v1599
        %vm1726 = vcmp.eq.s32.totalorder %v1692, %v1599
        %vm1727 = vcmp.eq.s32.totalorder %v1695, %v1599
        %v1728 = vsel %vm1696, 1, 0
        %v1729 = vsel %vm1697, 1, 0
        %v1730 = vsel %vm1698, 1, 0
        %v1731 = vsel %vm1699, 1, 0
        %v1732 = vsel %vm1700, 1, 0
        %v1733 = vsel %vm1701, 1, 0
        %v1734 = vsel %vm1702, 1, 0
        %v1735 = vsel %vm1703, 1, 0
        %v1736 = vsel %vm1704, 1, 0
        %v1737 = vsel %vm1705, 1, 0
        %v1738 = vsel %vm1706, 1, 0
        %v1739 = vsel %vm1707, 1, 0
        %v1740 = vsel %vm1708, 1, 0
        %v1741 = vsel %vm1709, 1, 0
        %v1742 = vsel %vm1710, 1, 0
        %v1743 = vsel %vm1711, 1, 0
        %v1744 = vsel %vm1712, 1, 0
        %v1745 = vsel %vm1713, 1, 0
        %v1746 = vsel %vm1714, 1, 0
        %v1747 = vsel %vm1715, 1, 0
        %v1748 = vsel %vm1716, 1, 0
        %v1749 = vsel %vm1717, 1, 0
        %v1750 = vsel %vm1718, 1, 0
        %v1751 = vsel %vm1719, 1, 0
        %v1752 = vsel %vm1720, 1, 0
        %v1753 = vsel %vm1721, 1, 0
        %v1754 = vsel %vm1722, 1, 0
        %v1755 = vsel %vm1723, 1, 0
        %v1756 = vsel %vm1724, 1, 0
        %v1757 = vsel %vm1725, 1, 0
        %v1758 = vsel %vm1726, 1, 0
        %v1759 = vsel %vm1727, 1, 0
        %v1760 = vcvt.s32.f32 %v1728
        %v1761 = vcvt.s32.f32 %v1729
        %v1762 = vcvt.s32.f32 %v1730
        %v1763 = vcvt.s32.f32 %v1731
        %v1764 = vcvt.s32.f32 %v1732
        %v1765 = vcvt.s32.f32 %v1733
        %v1766 = vcvt.s32.f32 %v1734
        %v1767 = vcvt.s32.f32 %v1735
        %v1768 = vcvt.s32.f32 %v1736
        %v1769 = vcvt.s32.f32 %v1737
        %v1770 = vcvt.s32.f32 %v1738
        %v1771 = vcvt.s32.f32 %v1739
        %v1772 = vcvt.s32.f32 %v1740
        %v1773 = vcvt.s32.f32 %v1741
        %v1774 = vcvt.s32.f32 %v1742
        %v1775 = vcvt.s32.f32 %v1743
        %v1776 = vcvt.s32.f32 %v1744
        %v1777 = vcvt.s32.f32 %v1745
        %v1778 = vcvt.s32.f32 %v1746
        %v1779 = vcvt.s32.f32 %v1747
        %v1780 = vcvt.s32.f32 %v1748
        %v1781 = vcvt.s32.f32 %v1749
        %v1782 = vcvt.s32.f32 %v1750
        %v1783 = vcvt.s32.f32 %v1751
        %v1784 = vcvt.s32.f32 %v1752
        %v1785 = vcvt.s32.f32 %v1753
        %v1786 = vcvt.s32.f32 %v1754
        %v1787 = vcvt.s32.f32 %v1755
        %v1788 = vcvt.s32.f32 %v1756
        %v1789 = vcvt.s32.f32 %v1757
        %v1790 = vcvt.s32.f32 %v1758
        %v1791 = vcvt.s32.f32 %v1759
        %v1792 = vpack.c.bf16 %v1761, %v1760
        %v1793 = vpack.c.bf16 %v1763, %v1762
        %v1794 = vpack.c.bf16 %v1765, %v1764
        %v1795 = vpack.c.bf16 %v1767, %v1766
        %v1796 = vpack.c.bf16 %v1769, %v1768
        %v1797 = vpack.c.bf16 %v1771, %v1770
        %v1798 = vpack.c.bf16 %v1773, %v1772
        %v1799 = vpack.c.bf16 %v1775, %v1774
        %v1800 = vpack.c.bf16 %v1777, %v1776
        %v1801 = vpack.c.bf16 %v1779, %v1778
        %v1802 = vpack.c.bf16 %v1781, %v1780
        %v1803 = vpack.c.bf16 %v1783, %v1782
        %v1804 = vpack.c.bf16 %v1785, %v1784
        %v1805 = vpack.c.bf16 %v1787, %v1786
        %v1806 = vpack.c.bf16 %v1789, %v1788
        %v1807 = vpack.c.bf16 %v1791, %v1790
        %v1808 = vld [vmem:[#allocation3] sm:$0xf]
        %v1809 = vld [vmem:[#allocation3 + $0x4] sm:$0xf]
        %v1810 = vld [vmem:[#allocation3 + $0x8] sm:$0xf]
        %v1811 = vld [vmem:[#allocation3 + $0xc] sm:$0xf]
        %v1812 = vld [vmem:[#allocation3 + $0x10] sm:$0xf]
        %v1813 = vld [vmem:[#allocation3 + $0x14] sm:$0xf]
        %v1814 = vld [vmem:[#allocation3 + $0x18] sm:$0xf]
        %v1815 = vld [vmem:[#allocation3 + $0x1c] sm:$0xf]
        %v1816 = vld [vmem:[#allocation3 + $0x20] sm:$0xf]
        %v1817 = vld [vmem:[#allocation3 + $0x24] sm:$0xf]
        %v1818 = vld [vmem:[#allocation3 + $0x28] sm:$0xf]
        %v1819 = vld [vmem:[#allocation3 + $0x2c] sm:$0xf]
        %v1820 = vld [vmem:[#allocation3 + $0x30] sm:$0xf]
        %v1821 = vld [vmem:[#allocation3 + $0x34] sm:$0xf]
        %v1822 = vld [vmem:[#allocation3 + $0x38] sm:$0xf]
        %v1823 = vld [vmem:[#allocation3 + $0x3c] sm:$0xf]
        %v1840 = vunpack.c.l.b16 %v1808
        %v1841 = vunpack.c.l.b16 %v1809
        %v1842 = vunpack.c.l.b16 %v1810
        %v1843 = vunpack.c.l.b16 %v1811
        %v1844 = vunpack.c.l.b16 %v1812
        %v1845 = vunpack.c.l.b16 %v1813
        %v1846 = vunpack.c.l.b16 %v1814
        %v1847 = vunpack.c.l.b16 %v1815
        %v1848 = vunpack.c.l.b16 %v1816
        %v1849 = vunpack.c.l.b16 %v1817
        %v1850 = vunpack.c.l.b16 %v1818
        %v1851 = vunpack.c.l.b16 %v1819
        %v1852 = vunpack.c.l.b16 %v1820
        %v1853 = vunpack.c.l.b16 %v1821
        %v1854 = vunpack.c.l.b16 %v1822
        %v1855 = vunpack.c.l.b16 %v1823
        %v1856 = vpack.c.b16 %v1841, %v1840
        %v1857 = vpack.c.b16 %v1843, %v1842
        %v1858 = vpack.c.b16 %v1845, %v1844
        %v1859 = vpack.c.b16 %v1847, %v1846
        %v1860 = vpack.c.b16 %v1849, %v1848
        %v1861 = vpack.c.b16 %v1851, %v1850
        %v1862 = vpack.c.b16 %v1853, %v1852
        %v1863 = vpack.c.b16 %v1855, %v1854
        %1872 = vmatprep.subr.bf16.mxu0 0
        %1873 = vmatpush1.bf16.msra.mxu0 %v1863
        %1874 = vmatprep.subr.bf16.mxu0 0
        %1875 = vmatpush1.bf16.msra.mxu0 %v1862
        %1876 = vmatprep.subr.bf16.mxu0 0
        %1877 = vmatpush1.bf16.msra.mxu0 %v1861
        %1878 = vmatprep.subr.bf16.mxu0 0
        %1879 = vmatpush1.bf16.msra.mxu0 %v1860
        %1880 = vmatprep.subr.bf16.mxu0 0
        %1881 = vmatpush1.bf16.msra.mxu0 %v1859
        %1882 = vmatprep.subr.bf16.mxu0 0
        %1883 = vmatpush1.bf16.msra.mxu0 %v1858
        %1884 = vmatprep.subr.bf16.mxu0 0
        %1885 = vmatpush1.bf16.msra.mxu0 %v1857
        %1886 = vmatprep.subr.bf16.mxu0 0
        %1887 = vmatpush1.bf16.msra.mxu0 %v1856
        %1888 = vmatprep.subr.bf16.mxu0 0
        %1889 = vmatpush2.bf16.msra.mxu0 0
        %1890 = vmatprep.subr.bf16.mxu0 0
        %1891 = vmatpush2.bf16.msra.mxu0 0
        %1892 = vmatprep.subr.bf16.mxu0 0
        %1893 = vmatpush2.bf16.msra.mxu0 0
        %1894 = vmatprep.subr.bf16.mxu0 0
        %1895 = vmatpush2.bf16.msra.mxu0 0
        %1896 = vmatprep.subr.bf16.mxu0 0
        %1897 = vmatpush2.bf16.msra.mxu0 0
        %1898 = vmatprep.subr.bf16.mxu0 0
        %1899 = vmatpush2.bf16.msra.mxu0 0
        %1900 = vmatprep.subr.bf16.mxu0 0
        %1901 = vmatpush2.bf16.msra.mxu0 0
        %1902 = vmatprep.subr.bf16.mxu0 0
        %1903 = vmatpush2.bf16.msra.mxu0 0
        %1904 = vmatprep.mubr.bf16.mxu0 0
        %1905 = vmatmul.mubr.bf16.gmra.mxu0 %v1792
        %v1906 = vpop.f32.mrf.mxu0
        %v1907 = vadd.f32 0.0, %v1906
        %v1908 = vpop.f32.mrf.mxu0
        %v1909 = vpop.f32.mrf.mxu0
        %v1910 = vadd.f32 0.0, %v1909
        %v1911 = vpop.f32.mrf.mxu0
        %1912 = vmatprep.mubr.bf16.mxu0 0
        %1913 = vmatmul.mubr.bf16.gmra.mxu0 %v1793
        %v1914 = vpop.f32.mrf.mxu0
        %v1915 = vadd.f32 0.0, %v1914
        %v1916 = vpop.f32.mrf.mxu0
        %v1917 = vpop.f32.mrf.mxu0
        %v1918 = vadd.f32 0.0, %v1917
        %v1919 = vpop.f32.mrf.mxu0
        %1920 = vmatprep.mubr.bf16.mxu0 0
        %1921 = vmatmul.mubr.bf16.gmra.mxu0 %v1794
        %v1922 = vpop.f32.mrf.mxu0
        %v1923 = vadd.f32 0.0, %v1922
        %v1924 = vpop.f32.mrf.mxu0
        %v1925 = vpop.f32.mrf.mxu0
        %v1926 = vadd.f32 0.0, %v1925
        %v1927 = vpop.f32.mrf.mxu0
        %1928 = vmatprep.mubr.bf16.mxu0 0
        %1929 = vmatmul.mubr.bf16.gmra.mxu0 %v1795
        %v1930 = vpop.f32.mrf.mxu0
        %v1931 = vadd.f32 0.0, %v1930
        %v1932 = vpop.f32.mrf.mxu0
        %v1933 = vpop.f32.mrf.mxu0
        %v1934 = vadd.f32 0.0, %v1933
        %v1935 = vpop.f32.mrf.mxu0
        %1936 = vmatprep.mubr.bf16.mxu0 0
        %1937 = vmatmul.mubr.bf16.gmra.mxu0 %v1796
        %v1938 = vpop.f32.mrf.mxu0
        %v1939 = vadd.f32 0.0, %v1938
        %v1940 = vpop.f32.mrf.mxu0
        %v1941 = vpop.f32.mrf.mxu0
        %v1942 = vadd.f32 0.0, %v1941
        %v1943 = vpop.f32.mrf.mxu0
        %1944 = vmatprep.mubr.bf16.mxu0 0
        %1945 = vmatmul.mubr.bf16.gmra.mxu0 %v1797
        %v1946 = vpop.f32.mrf.mxu0
        %v1947 = vadd.f32 0.0, %v1946
        %v1948 = vpop.f32.mrf.mxu0
        %v1949 = vpop.f32.mrf.mxu0
        %v1950 = vadd.f32 0.0, %v1949
        %v1951 = vpop.f32.mrf.mxu0
        %1952 = vmatprep.mubr.bf16.mxu0 0
        %1953 = vmatmul.mubr.bf16.gmra.mxu0 %v1798
        %v1954 = vpop.f32.mrf.mxu0
        %v1955 = vadd.f32 0.0, %v1954
        %v1956 = vpop.f32.mrf.mxu0
        %v1957 = vpop.f32.mrf.mxu0
        %v1958 = vadd.f32 0.0, %v1957
        %v1959 = vpop.f32.mrf.mxu0
        %1960 = vmatprep.mubr.bf16.mxu0 0
        %1961 = vmatmul.mubr.bf16.gmra.mxu0 %v1799
        %v1962 = vpop.f32.mrf.mxu0
        %v1963 = vadd.f32 0.0, %v1962
        %v1964 = vpop.f32.mrf.mxu0
        %v1965 = vpop.f32.mrf.mxu0
        %v1966 = vadd.f32 0.0, %v1965
        %v1967 = vpop.f32.mrf.mxu0
        %1968 = vmatprep.mubr.bf16.mxu0 0
        %1969 = vmatmul.mubr.bf16.gmra.mxu0 %v1800
        %v1970 = vpop.f32.mrf.mxu0
        %v1971 = vadd.f32 0.0, %v1970
        %v1972 = vpop.f32.mrf.mxu0
        %v1973 = vpop.f32.mrf.mxu0
        %v1974 = vadd.f32 0.0, %v1973
        %v1975 = vpop.f32.mrf.mxu0
        %1976 = vmatprep.mubr.bf16.mxu0 0
        %1977 = vmatmul.mubr.bf16.gmra.mxu0 %v1801
        %v1978 = vpop.f32.mrf.mxu0
        %v1979 = vadd.f32 0.0, %v1978
        %v1980 = vpop.f32.mrf.mxu0
        %v1981 = vpop.f32.mrf.mxu0
        %v1982 = vadd.f32 0.0, %v1981
        %v1983 = vpop.f32.mrf.mxu0
        %1984 = vmatprep.mubr.bf16.mxu0 0
        %1985 = vmatmul.mubr.bf16.gmra.mxu0 %v1802
        %v1986 = vpop.f32.mrf.mxu0
        %v1987 = vadd.f32 0.0, %v1986
        %v1988 = vpop.f32.mrf.mxu0
        %v1989 = vpop.f32.mrf.mxu0
        %v1990 = vadd.f32 0.0, %v1989
        %v1991 = vpop.f32.mrf.mxu0
        %1992 = vmatprep.mubr.bf16.mxu0 0
        %1993 = vmatmul.mubr.bf16.gmra.mxu0 %v1803
        %v1994 = vpop.f32.mrf.mxu0
        %v1995 = vadd.f32 0.0, %v1994
        %v1996 = vpop.f32.mrf.mxu0
        %v1997 = vpop.f32.mrf.mxu0
        %v1998 = vadd.f32 0.0, %v1997
        %v1999 = vpop.f32.mrf.mxu0
        %2000 = vmatprep.mubr.bf16.mxu0 0
        %2001 = vmatmul.mubr.bf16.gmra.mxu0 %v1804
        %v2002 = vpop.f32.mrf.mxu0
        %v2003 = vadd.f32 0.0, %v2002
        %v2004 = vpop.f32.mrf.mxu0
        %v2005 = vpop.f32.mrf.mxu0
        %v2006 = vadd.f32 0.0, %v2005
        %v2007 = vpop.f32.mrf.mxu0
        %2008 = vmatprep.mubr.bf16.mxu0 0
        %2009 = vmatmul.mubr.bf16.gmra.mxu0 %v1805
        %v2010 = vpop.f32.mrf.mxu0
        %v2011 = vadd.f32 0.0, %v2010
        %v2012 = vpop.f32.mrf.mxu0
        %v2013 = vpop.f32.mrf.mxu0
        %v2014 = vadd.f32 0.0, %v2013
        %v2015 = vpop.f32.mrf.mxu0
        %2016 = vmatprep.mubr.bf16.mxu0 0
        %2017 = vmatmul.mubr.bf16.gmra.mxu0 %v1806
        %v2018 = vpop.f32.mrf.mxu0
        %v2019 = vadd.f32 0.0, %v2018
        %v2020 = vpop.f32.mrf.mxu0
        %v2021 = vpop.f32.mrf.mxu0
        %v2022 = vadd.f32 0.0, %v2021
        %v2023 = vpop.f32.mrf.mxu0
        %2024 = vmatprep.mubr.bf16.mxu0 0
        %2025 = vmatmul.mubr.bf16.gmra.mxu0 %v1807
        %v2026 = vpop.f32.mrf.mxu0
        %v2027 = vadd.f32 0.0, %v2026
        %v2028 = vpop.f32.mrf.mxu0
        %v2029 = vpop.f32.mrf.mxu0
        %v2030 = vadd.f32 0.0, %v2029
        %v2031 = vpop.f32.mrf.mxu0
        %2032 = vdwg.mxu0
        %v2033 = vmul.f32 %v1907, %v1440
        %v2034 = vmul.f32 %v1910, %v1443
        %v2035 = vmul.f32 %v1915, %v1448
        %v2036 = vmul.f32 %v1918, %v1451
        %v2037 = vmul.f32 %v1923, %v1456
        %v2038 = vmul.f32 %v1926, %v1459
        %v2039 = vmul.f32 %v1931, %v1464
        %v2040 = vmul.f32 %v1934, %v1467
        %v2041 = vmul.f32 %v1939, %v1472
        %v2042 = vmul.f32 %v1942, %v1475
        %v2043 = vmul.f32 %v1947, %v1480
        %v2044 = vmul.f32 %v1950, %v1483
        %v2045 = vmul.f32 %v1955, %v1488
        %v2046 = vmul.f32 %v1958, %v1491
        %v2047 = vmul.f32 %v1963, %v1496
        %v2048 = vmul.f32 %v1966, %v1499
        %v2049 = vmul.f32 %v1971, %v1504
        %v2050 = vmul.f32 %v1974, %v1507
        %v2051 = vmul.f32 %v1979, %v1512
        %v2052 = vmul.f32 %v1982, %v1515
        %v2053 = vmul.f32 %v1987, %v1520
        %v2054 = vmul.f32 %v1990, %v1523
        %v2055 = vmul.f32 %v1995, %v1528
        %v2056 = vmul.f32 %v1998, %v1531
        %v2057 = vmul.f32 %v2003, %v1536
        %v2058 = vmul.f32 %v2006, %v1539
        %v2059 = vmul.f32 %v2011, %v1544
        %v2060 = vmul.f32 %v2014, %v1547
        %v2061 = vmul.f32 %v2019, %v1552
        %v2062 = vmul.f32 %v2022, %v1555
        %v2063 = vmul.f32 %v2027, %v1560
        %v2064 = vmul.f32 %v2030, %v1563
        %v2065 = vpack.c.bf16 %v2034, %v2033
        %v2066 = vpack.c.bf16 %v2036, %v2035
        %v2067 = vpack.c.bf16 %v2038, %v2037
        %v2068 = vpack.c.bf16 %v2040, %v2039
        %v2069 = vpack.c.bf16 %v2042, %v2041
        %v2070 = vpack.c.bf16 %v2044, %v2043
        %v2071 = vpack.c.bf16 %v2046, %v2045
        %v2072 = vpack.c.bf16 %v2048, %v2047
        %v2073 = vpack.c.bf16 %v2050, %v2049
        %v2074 = vpack.c.bf16 %v2052, %v2051
        %v2075 = vpack.c.bf16 %v2054, %v2053
        %v2076 = vpack.c.bf16 %v2056, %v2055
        %v2077 = vpack.c.bf16 %v2058, %v2057
        %v2078 = vpack.c.bf16 %v2060, %v2059
        %v2079 = vpack.c.bf16 %v2062, %v2061
        %v2080 = vpack.c.bf16 %v2064, %v2063
        %v2081 = vld [vmem:[%s521] sm:$0x3]
        %v2082 = vlaneseq
        %v2083 = vshrl.u32 %v2082, 7
        %v2084 = vadd.s32 %v2083, 8
        %v2085 = vadd.s32 %v2083, 16
        %v2086 = vadd.s32 %v2083, 24
        %v2087 = vadd.s32 %v2083, 32
        %v2088 = vadd.s32 %v2083, 40
        %v2089 = vadd.s32 %v2083, 48
        %v2090 = vadd.s32 %v2083, 56
        %v2091 = vadd.s32 %v2083, 64
        %v2092 = vadd.s32 %v2083, 72
        %v2093 = vadd.s32 %v2083, 80
        %v2094 = vadd.s32 %v2083, 88
        %v2095 = vadd.s32 %v2083, 96
        %v2096 = vadd.s32 %v2083, 104
        %v2097 = vadd.s32 %v2083, 112
        %v2098 = vadd.s32 %v2083, 120
        %v2099 = vlaneseq
        %v2100 = vshrl.u32 %v2099, 7
        %v2101 = vsub.s32 0, %v2100
        %v2102 = vrot.slane %v2081, %v2101
        %v2103 = vlaneseq
        %v2104 = vshrl.u32 %v2103, 7
        %v2105 = vsub.s32 1, %v2104
        %v2106 = vrot.slane %v2081, %v2105
        %vm2107 = vcmp.eq.s32.totalorder %v2102, %v2083
        %vm2108 = vcmp.eq.s32.totalorder %v2106, %v2083
        %vm2109 = vcmp.eq.s32.totalorder %v2102, %v2084
        %vm2110 = vcmp.eq.s32.totalorder %v2106, %v2084
        %vm2111 = vcmp.eq.s32.totalorder %v2102, %v2085
        %vm2112 = vcmp.eq.s32.totalorder %v2106, %v2085
        %vm2113 = vcmp.eq.s32.totalorder %v2102, %v2086
        %vm2114 = vcmp.eq.s32.totalorder %v2106, %v2086
        %vm2115 = vcmp.eq.s32.totalorder %v2102, %v2087
        %vm2116 = vcmp.eq.s32.totalorder %v2106, %v2087
        %vm2117 = vcmp.eq.s32.totalorder %v2102, %v2088
        %vm2118 = vcmp.eq.s32.totalorder %v2106, %v2088
        %vm2119 = vcmp.eq.s32.totalorder %v2102, %v2089
        %vm2120 = vcmp.eq.s32.totalorder %v2106, %v2089
        %vm2121 = vcmp.eq.s32.totalorder %v2102, %v2090
        %vm2122 = vcmp.eq.s32.totalorder %v2106, %v2090
        %vm2123 = vcmp.eq.s32.totalorder %v2102, %v2091
        %vm2124 = vcmp.eq.s32.totalorder %v2106, %v2091
        %vm2125 = vcmp.eq.s32.totalorder %v2102, %v2092
        %vm2126 = vcmp.eq.s32.totalorder %v2106, %v2092
        %vm2127 = vcmp.eq.s32.totalorder %v2102, %v2093
        %vm2128 = vcmp.eq.s32.totalorder %v2106, %v2093
        %vm2129 = vcmp.eq.s32.totalorder %v2102, %v2094
        %vm2130 = vcmp.eq.s32.totalorder %v2106, %v2094
        %vm2131 = vcmp.eq.s32.totalorder %v2102, %v2095
        %vm2132 = vcmp.eq.s32.totalorder %v2106, %v2095
        %vm2133 = vcmp.eq.s32.totalorder %v2102, %v2096
        %vm2134 = vcmp.eq.s32.totalorder %v2106, %v2096
        %vm2135 = vcmp.eq.s32.totalorder %v2102, %v2097
        %vm2136 = vcmp.eq.s32.totalorder %v2106, %v2097
        %vm2137 = vcmp.eq.s32.totalorder %v2102, %v2098
        %vm2138 = vcmp.eq.s32.totalorder %v2106, %v2098
        %v2139 = vsel %vm2107, 1, 0
        %v2140 = vsel %vm2108, 1, 0
        %v2141 = vsel %vm2109, 1, 0
        %v2142 = vsel %vm2110, 1, 0
        %v2143 = vsel %vm2111, 1, 0
        %v2144 = vsel %vm2112, 1, 0
        %v2145 = vsel %vm2113, 1, 0
        %v2146 = vsel %vm2114, 1, 0
        %v2147 = vsel %vm2115, 1, 0
        %v2148 = vsel %vm2116, 1, 0
        %v2149 = vsel %vm2117, 1, 0
        %v2150 = vsel %vm2118, 1, 0
        %v2151 = vsel %vm2119, 1, 0
        %v2152 = vsel %vm2120, 1, 0
        %v2153 = vsel %vm2121, 1, 0
        %v2154 = vsel %vm2122, 1, 0
        %v2155 = vsel %vm2123, 1, 0
        %v2156 = vsel %vm2124, 1, 0
        %v2157 = vsel %vm2125, 1, 0
        %v2158 = vsel %vm2126, 1, 0
        %v2159 = vsel %vm2127, 1, 0
        %v2160 = vsel %vm2128, 1, 0
        %v2161 = vsel %vm2129, 1, 0
        %v2162 = vsel %vm2130, 1, 0
        %v2163 = vsel %vm2131, 1, 0
        %v2164 = vsel %vm2132, 1, 0
        %v2165 = vsel %vm2133, 1, 0
        %v2166 = vsel %vm2134, 1, 0
        %v2167 = vsel %vm2135, 1, 0
        %v2168 = vsel %vm2136, 1, 0
        %v2169 = vsel %vm2137, 1, 0
        %v2170 = vsel %vm2138, 1, 0
        %v2171 = vcvt.s32.f32 %v2139
        %v2172 = vcvt.s32.f32 %v2140
        %v2173 = vcvt.s32.f32 %v2141
        %v2174 = vcvt.s32.f32 %v2142
        %v2175 = vcvt.s32.f32 %v2143
        %v2176 = vcvt.s32.f32 %v2144
        %v2177 = vcvt.s32.f32 %v2145
        %v2178 = vcvt.s32.f32 %v2146
        %v2179 = vcvt.s32.f32 %v2147
        %v2180 = vcvt.s32.f32 %v2148
        %v2181 = vcvt.s32.f32 %v2149
        %v2182 = vcvt.s32.f32 %v2150
        %v2183 = vcvt.s32.f32 %v2151
        %v2184 = vcvt.s32.f32 %v2152
        %v2185 = vcvt.s32.f32 %v2153
        %v2186 = vcvt.s32.f32 %v2154
        %v2187 = vcvt.s32.f32 %v2155
        %v2188 = vcvt.s32.f32 %v2156
        %v2189 = vcvt.s32.f32 %v2157
        %v2190 = vcvt.s32.f32 %v2158
        %v2191 = vcvt.s32.f32 %v2159
        %v2192 = vcvt.s32.f32 %v2160
        %v2193 = vcvt.s32.f32 %v2161
        %v2194 = vcvt.s32.f32 %v2162
        %v2195 = vcvt.s32.f32 %v2163
        %v2196 = vcvt.s32.f32 %v2164
        %v2197 = vcvt.s32.f32 %v2165
        %v2198 = vcvt.s32.f32 %v2166
        %v2199 = vcvt.s32.f32 %v2167
        %v2200 = vcvt.s32.f32 %v2168
        %v2201 = vcvt.s32.f32 %v2169
        %v2202 = vcvt.s32.f32 %v2170
        %v2203 = vpack.c.bf16 %v2173, %v2171
        %v2204 = vpack.c.bf16 %v2174, %v2172
        %v2205 = vpack.c.bf16 %v2177, %v2175
        %v2206 = vpack.c.bf16 %v2178, %v2176
        %v2207 = vpack.c.bf16 %v2181, %v2179
        %v2208 = vpack.c.bf16 %v2182, %v2180
        %v2209 = vpack.c.bf16 %v2185, %v2183
        %v2210 = vpack.c.bf16 %v2186, %v2184
        %v2211 = vpack.c.bf16 %v2189, %v2187
        %v2212 = vpack.c.bf16 %v2190, %v2188
        %v2213 = vpack.c.bf16 %v2193, %v2191
        %v2214 = vpack.c.bf16 %v2194, %v2192
        %v2215 = vpack.c.bf16 %v2197, %v2195
        %v2216 = vpack.c.bf16 %v2198, %v2196
        %v2217 = vpack.c.bf16 %v2201, %v2199
        %v2218 = vpack.c.bf16 %v2202, %v2200
        %v2219 = vld [vmem:[#allocation4] sm:$0xff]
        %v2220 = vld [vmem:[#allocation4 + $0x8] sm:$0xff]
        %v2221 = vld [vmem:[#allocation4 + $0x10] sm:$0xff]
        %v2222 = vld [vmem:[#allocation4 + $0x18] sm:$0xff]
        %v2223 = vld [vmem:[#allocation4 + $0x20] sm:$0xff]
        %v2224 = vld [vmem:[#allocation4 + $0x28] sm:$0xff]
        %v2225 = vld [vmem:[#allocation4 + $0x30] sm:$0xff]
        %v2226 = vld [vmem:[#allocation4 + $0x38] sm:$0xff]
        %v2227 = vld [vmem:[#allocation4 + $0x40] sm:$0xff]
        %v2228 = vld [vmem:[#allocation4 + $0x48] sm:$0xff]
        %v2229 = vld [vmem:[#allocation4 + $0x50] sm:$0xff]
        %v2230 = vld [vmem:[#allocation4 + $0x58] sm:$0xff]
        %v2231 = vld [vmem:[#allocation4 + $0x60] sm:$0xff]
        %v2232 = vld [vmem:[#allocation4 + $0x68] sm:$0xff]
        %v2233 = vld [vmem:[#allocation4 + $0x70] sm:$0xff]
        %v2234 = vld [vmem:[#allocation4 + $0x78] sm:$0xff]
        %2235 = vmatprep.subr.bf16.mxu0 0
        %2236 = vmatpush1.bf16.msra.mxu0 %v2072
        %2237 = vmatprep.subr.bf16.mxu0 0
        %2238 = vmatpush1.bf16.msra.mxu0 %v2071
        %2239 = vmatprep.subr.bf16.mxu0 0
        %2240 = vmatpush1.bf16.msra.mxu0 %v2070
        %2241 = vmatprep.subr.bf16.mxu0 0
        %2242 = vmatpush1.bf16.msra.mxu0 %v2069
        %2243 = vmatprep.subr.bf16.mxu0 0
        %2244 = vmatpush1.bf16.msra.mxu0 %v2068
        %2245 = vmatprep.subr.bf16.mxu0 0
        %2246 = vmatpush1.bf16.msra.mxu0 %v2067
        %2247 = vmatprep.subr.bf16.mxu0 0
        %2248 = vmatpush1.bf16.msra.mxu0 %v2066
        %2249 = vmatprep.subr.bf16.mxu0 0
        %2250 = vmatpush1.bf16.msra.mxu0 %v2065
        %2251 = vmatprep.subr.bf16.mxu0 0
        %2252 = vmatpush2.bf16.msra.mxu0 %v2080
        %2253 = vmatprep.subr.bf16.mxu0 0
        %2254 = vmatpush2.bf16.msra.mxu0 %v2079
        %2255 = vmatprep.subr.bf16.mxu0 0
        %2256 = vmatpush2.bf16.msra.mxu0 %v2078
        %2257 = vmatprep.subr.bf16.mxu0 0
        %2258 = vmatpush2.bf16.msra.mxu0 %v2077
        %2259 = vmatprep.subr.bf16.mxu0 0
        %2260 = vmatpush2.bf16.msra.mxu0 %v2076
        %2261 = vmatprep.subr.bf16.mxu0 0
        %2262 = vmatpush2.bf16.msra.mxu0 %v2075
        %2263 = vmatprep.subr.bf16.mxu0 0
        %2264 = vmatpush2.bf16.msra.mxu0 %v2074
        %2265 = vmatprep.subr.bf16.mxu0 0
        %2266 = vmatpush2.bf16.msra.mxu0 %v2073
        %2267 = vmatprep.mubr.bf16.mxu0 %v2204
        %2268 = vmatmul.mubr.bf16.gmra.mxu0 %v2203
        %v2269 = vpop.f32.mrf.mxu0
        %v2270 = vadd.f32 0.0, %v2269
        %v2271 = vpop.f32.mrf.mxu0
        %v2272 = vpop.f32.mrf.mxu0
        %v2273 = vadd.f32 0.0, %v2272
        %v2274 = vpop.f32.mrf.mxu0
        %2275 = vmatprep.mubr.bf16.mxu0 %v2206
        %2276 = vmatmul.mubr.bf16.gmra.mxu0 %v2205
        %v2277 = vpop.f32.mrf.mxu0
        %v2278 = vadd.f32 0.0, %v2277
        %v2279 = vpop.f32.mrf.mxu0
        %v2280 = vpop.f32.mrf.mxu0
        %v2281 = vadd.f32 0.0, %v2280
        %v2282 = vpop.f32.mrf.mxu0
        %2283 = vmatprep.mubr.bf16.mxu0 %v2208
        %2284 = vmatmul.mubr.bf16.gmra.mxu0 %v2207
        %v2285 = vpop.f32.mrf.mxu0
        %v2286 = vadd.f32 0.0, %v2285
        %v2287 = vpop.f32.mrf.mxu0
        %v2288 = vpop.f32.mrf.mxu0
        %v2289 = vadd.f32 0.0, %v2288
        %v2290 = vpop.f32.mrf.mxu0
        %2291 = vmatprep.mubr.bf16.mxu0 %v2210
        %2292 = vmatmul.mubr.bf16.gmra.mxu0 %v2209
        %v2293 = vpop.f32.mrf.mxu0
        %v2294 = vadd.f32 0.0, %v2293
        %v2295 = vpop.f32.mrf.mxu0
        %v2296 = vpop.f32.mrf.mxu0
        %v2297 = vadd.f32 0.0, %v2296
        %v2298 = vpop.f32.mrf.mxu0
        %2299 = vmatprep.mubr.bf16.mxu0 %v2212
        %2300 = vmatmul.mubr.bf16.gmra.mxu0 %v2211
        %v2301 = vpop.f32.mrf.mxu0
        %v2302 = vadd.f32 0.0, %v2301
        %v2303 = vpop.f32.mrf.mxu0
        %v2304 = vpop.f32.mrf.mxu0
        %v2305 = vadd.f32 0.0, %v2304
        %v2306 = vpop.f32.mrf.mxu0
        %2307 = vmatprep.mubr.bf16.mxu0 %v2214
        %2308 = vmatmul.mubr.bf16.gmra.mxu0 %v2213
        %v2309 = vpop.f32.mrf.mxu0
        %v2310 = vadd.f32 0.0, %v2309
        %v2311 = vpop.f32.mrf.mxu0
        %v2312 = vpop.f32.mrf.mxu0
        %v2313 = vadd.f32 0.0, %v2312
        %v2314 = vpop.f32.mrf.mxu0
        %2315 = vmatprep.mubr.bf16.mxu0 %v2216
        %2316 = vmatmul.mubr.bf16.gmra.mxu0 %v2215
        %v2317 = vpop.f32.mrf.mxu0
        %v2318 = vadd.f32 0.0, %v2317
        %v2319 = vpop.f32.mrf.mxu0
        %v2320 = vpop.f32.mrf.mxu0
        %v2321 = vadd.f32 0.0, %v2320
        %v2322 = vpop.f32.mrf.mxu0
        %2323 = vmatprep.mubr.bf16.mxu0 %v2218
        %2324 = vmatmul.mubr.bf16.gmra.mxu0 %v2217
        %v2325 = vpop.f32.mrf.mxu0
        %v2326 = vadd.f32 0.0, %v2325
        %v2327 = vpop.f32.mrf.mxu0
        %v2328 = vpop.f32.mrf.mxu0
        %v2329 = vadd.f32 0.0, %v2328
        %v2330 = vpop.f32.mrf.mxu0
        %2331 = vdwg.mxu0
        %v2332 = vadd.f32 %v2219, %v2270
        %v2333 = vadd.f32 %v2220, %v2273
        %v2334 = vadd.f32 %v2221, %v2278
        %v2335 = vadd.f32 %v2222, %v2281
        %v2336 = vadd.f32 %v2223, %v2286
        %v2337 = vadd.f32 %v2224, %v2289
        %v2338 = vadd.f32 %v2225, %v2294
        %v2339 = vadd.f32 %v2226, %v2297
        %v2340 = vadd.f32 %v2227, %v2302
        %v2341 = vadd.f32 %v2228, %v2305
        %v2342 = vadd.f32 %v2229, %v2310
        %v2343 = vadd.f32 %v2230, %v2313
        %v2344 = vadd.f32 %v2231, %v2318
        %v2345 = vadd.f32 %v2232, %v2321
        %v2346 = vadd.f32 %v2233, %v2326
        %v2347 = vadd.f32 %v2234, %v2329
        %2348 = vst [vmem:[#allocation4] sm:$0xff] %v2332
        %2349 = vst [vmem:[#allocation4 + $0x8] sm:$0xff] %v2333
        %2350 = vst [vmem:[#allocation4 + $0x10] sm:$0xff] %v2334
        %2351 = vst [vmem:[#allocation4 + $0x18] sm:$0xff] %v2335
        %2352 = vst [vmem:[#allocation4 + $0x20] sm:$0xff] %v2336
        %2353 = vst [vmem:[#allocation4 + $0x28] sm:$0xff] %v2337
        %2354 = vst [vmem:[#allocation4 + $0x30] sm:$0xff] %v2338
        %2355 = vst [vmem:[#allocation4 + $0x38] sm:$0xff] %v2339
        %2356 = vst [vmem:[#allocation4 + $0x40] sm:$0xff] %v2340
        %2357 = vst [vmem:[#allocation4 + $0x48] sm:$0xff] %v2341
        %2358 = vst [vmem:[#allocation4 + $0x50] sm:$0xff] %v2342
        %2359 = vst [vmem:[#allocation4 + $0x58] sm:$0xff] %v2343
        %2360 = vst [vmem:[#allocation4 + $0x60] sm:$0xff] %v2344
        %2361 = vst [vmem:[#allocation4 + $0x68] sm:$0xff] %v2345
        %2362 = vst [vmem:[#allocation4 + $0x70] sm:$0xff] %v2346
        %2363 = vst [vmem:[#allocation4 + $0x78] sm:$0xff] %v2347
        // Predicated region
        $region77: #{gnn_forward.1} parent=59 // pred_check
          %p2364 = pneg %p545
        $region78: #{gnn_forward.1} parent=59 // pred_check_branch
          %2366 = sbr.rel (%p2364) target = $region80
        $region79: #{gnn_forward.1} parent=59 // pred_region
          %v2367 = vld [vmem:[#allocation4] sm:$0xff]
          %v2368 = vld [vmem:[#allocation4 + $0x8] sm:$0xff]
          %v2369 = vld [vmem:[#allocation4 + $0x10] sm:$0xff]
          %v2370 = vld [vmem:[#allocation4 + $0x18] sm:$0xff]
          %v2371 = vld [vmem:[#allocation4 + $0x20] sm:$0xff]
          %v2372 = vld [vmem:[#allocation4 + $0x28] sm:$0xff]
          %v2373 = vld [vmem:[#allocation4 + $0x30] sm:$0xff]
          %v2374 = vld [vmem:[#allocation4 + $0x38] sm:$0xff]
          %v2375 = vld [vmem:[#allocation4 + $0x40] sm:$0xff]
          %v2376 = vld [vmem:[#allocation4 + $0x48] sm:$0xff]
          %v2377 = vld [vmem:[#allocation4 + $0x50] sm:$0xff]
          %v2378 = vld [vmem:[#allocation4 + $0x58] sm:$0xff]
          %v2379 = vld [vmem:[#allocation4 + $0x60] sm:$0xff]
          %v2380 = vld [vmem:[#allocation4 + $0x68] sm:$0xff]
          %v2381 = vld [vmem:[#allocation4 + $0x70] sm:$0xff]
          %v2382 = vld [vmem:[#allocation4 + $0x78] sm:$0xff]
          %v2383 = vmax.f32 %v2367, 0.0
          %v2384 = vmax.f32 %v2368, 0.0
          %v2385 = vmax.f32 %v2369, 0.0
          %v2386 = vmax.f32 %v2370, 0.0
          %v2387 = vmax.f32 %v2371, 0.0
          %v2388 = vmax.f32 %v2372, 0.0
          %v2389 = vmax.f32 %v2373, 0.0
          %v2390 = vmax.f32 %v2374, 0.0
          %v2391 = vmax.f32 %v2375, 0.0
          %v2392 = vmax.f32 %v2376, 0.0
          %v2393 = vmax.f32 %v2377, 0.0
          %v2394 = vmax.f32 %v2378, 0.0
          %v2395 = vmax.f32 %v2379, 0.0
          %v2396 = vmax.f32 %v2380, 0.0
          %v2397 = vmax.f32 %v2381, 0.0
          %v2398 = vmax.f32 %v2382, 0.0
          %v2399 = vpack.c.bf16 %v2384, %v2383
          %v2400 = vpack.c.bf16 %v2386, %v2385
          %v2401 = vpack.c.bf16 %v2388, %v2387
          %v2402 = vpack.c.bf16 %v2390, %v2389
          %v2403 = vpack.c.bf16 %v2392, %v2391
          %v2404 = vpack.c.bf16 %v2394, %v2393
          %v2405 = vpack.c.bf16 %v2396, %v2395
          %v2406 = vpack.c.bf16 %v2398, %v2397
          %v2415 = vunpack.c.l.b16 %v2399
          %v2416 = vunpack.c.h.b16 %v2399
          %v2417 = vunpack.c.l.b16 %v2400
          %v2418 = vunpack.c.h.b16 %v2400
          %v2419 = vunpack.c.l.b16 %v2401
          %v2420 = vunpack.c.h.b16 %v2401
          %v2421 = vunpack.c.l.b16 %v2402
          %v2422 = vunpack.c.h.b16 %v2402
          %v2423 = vunpack.c.l.b16 %v2403
          %v2424 = vunpack.c.h.b16 %v2403
          %v2425 = vunpack.c.l.b16 %v2404
          %v2426 = vunpack.c.h.b16 %v2404
          %v2427 = vunpack.c.l.b16 %v2405
          %v2428 = vunpack.c.h.b16 %v2405
          %v2429 = vunpack.c.l.b16 %v2406
          %v2430 = vunpack.c.h.b16 %v2406
          %v2431 = vpack.c.b16 %v2415, %v2415
          %v2432 = vpack.c.b16 %v2416, %v2416
          %v2433 = vpack.c.b16 %v2417, %v2417
          %v2434 = vpack.c.b16 %v2418, %v2418
          %v2435 = vpack.c.b16 %v2419, %v2419
          %v2436 = vpack.c.b16 %v2420, %v2420
          %v2437 = vpack.c.b16 %v2421, %v2421
          %v2438 = vpack.c.b16 %v2422, %v2422
          %v2439 = vpack.c.b16 %v2423, %v2423
          %v2440 = vpack.c.b16 %v2424, %v2424
          %v2441 = vpack.c.b16 %v2425, %v2425
          %v2442 = vpack.c.b16 %v2426, %v2426
          %v2443 = vpack.c.b16 %v2427, %v2427
          %v2444 = vpack.c.b16 %v2428, %v2428
          %v2445 = vpack.c.b16 %v2429, %v2429
          %v2446 = vpack.c.b16 %v2430, %v2430
          %2463 = vst [vmem:[#allocation2] sm:$0xf] %v2431
          %2464 = vst [vmem:[#allocation2 + $0x4] sm:$0xf] %v2432
          %2465 = vst [vmem:[#allocation2 + $0x8] sm:$0xf] %v2433
          %2466 = vst [vmem:[#allocation2 + $0xc] sm:$0xf] %v2434
          %2467 = vst [vmem:[#allocation2 + $0x10] sm:$0xf] %v2435
          %2468 = vst [vmem:[#allocation2 + $0x14] sm:$0xf] %v2436
          %2469 = vst [vmem:[#allocation2 + $0x18] sm:$0xf] %v2437
          %2470 = vst [vmem:[#allocation2 + $0x1c] sm:$0xf] %v2438
          %2471 = vst [vmem:[#allocation2 + $0x20] sm:$0xf] %v2439
          %2472 = vst [vmem:[#allocation2 + $0x24] sm:$0xf] %v2440
          %2473 = vst [vmem:[#allocation2 + $0x28] sm:$0xf] %v2441
          %2474 = vst [vmem:[#allocation2 + $0x2c] sm:$0xf] %v2442
          %2475 = vst [vmem:[#allocation2 + $0x30] sm:$0xf] %v2443
          %2476 = vst [vmem:[#allocation2 + $0x34] sm:$0xf] %v2444
          %2477 = vst [vmem:[#allocation2 + $0x38] sm:$0xf] %v2445
          %2478 = vst [vmem:[#allocation2 + $0x3c] sm:$0xf] %v2446
        $region80: #{gnn_forward.1} parent=59 // pred_fallthru
          _
        %p2479 = scmp.eq.s32.totalorder %s32, 5
        %p2480 = pnand %p545, %p2479
        %p2481 = pneg %p2480
        // Predicated region
        $region81: #{gnn_forward.1} parent=59 // pred_check
          _
        $region82: #{gnn_forward.1} parent=59 // pred_check_branch
          %2483 = sbr.rel (%p2480) target = $region84
        $region83: #{gnn_forward.1} parent=59 // pred_region
          %v2484 = vld [vmem:[#allocation4] sm:$0xff]
          %v2485 = vld [vmem:[#allocation4 + $0x8] sm:$0xff]
          %v2486 = vld [vmem:[#allocation4 + $0x10] sm:$0xff]
          %v2487 = vld [vmem:[#allocation4 + $0x18] sm:$0xff]
          %v2488 = vld [vmem:[#allocation4 + $0x20] sm:$0xff]
          %v2489 = vld [vmem:[#allocation4 + $0x28] sm:$0xff]
          %v2490 = vld [vmem:[#allocation4 + $0x30] sm:$0xff]
          %v2491 = vld [vmem:[#allocation4 + $0x38] sm:$0xff]
          %v2492 = vld [vmem:[#allocation4 + $0x40] sm:$0xff]
          %v2493 = vld [vmem:[#allocation4 + $0x48] sm:$0xff]
          %v2494 = vld [vmem:[#allocation4 + $0x50] sm:$0xff]
          %v2495 = vld [vmem:[#allocation4 + $0x58] sm:$0xff]
          %v2496 = vld [vmem:[#allocation4 + $0x60] sm:$0xff]
          %v2497 = vld [vmem:[#allocation4 + $0x68] sm:$0xff]
          %v2498 = vld [vmem:[#allocation4 + $0x70] sm:$0xff]
          %v2499 = vld [vmem:[#allocation4 + $0x78] sm:$0xff]
          %v2500 = vmax.f32 %v2484, 0.0
          %v2501 = vmax.f32 %v2485, 0.0
          %v2502 = vmax.f32 %v2486, 0.0
          %v2503 = vmax.f32 %v2487, 0.0
          %v2504 = vmax.f32 %v2488, 0.0
          %v2505 = vmax.f32 %v2489, 0.0
          %v2506 = vmax.f32 %v2490, 0.0
          %v2507 = vmax.f32 %v2491, 0.0
          %v2508 = vmax.f32 %v2492, 0.0
          %v2509 = vmax.f32 %v2493, 0.0
          %v2510 = vmax.f32 %v2494, 0.0
          %v2511 = vmax.f32 %v2495, 0.0
          %v2512 = vmax.f32 %v2496, 0.0
          %v2513 = vmax.f32 %v2497, 0.0
          %v2514 = vmax.f32 %v2498, 0.0
          %v2515 = vmax.f32 %v2499, 0.0
          %v2516 = vpack.c.bf16 %v2501, %v2500
          %v2517 = vpack.c.bf16 %v2503, %v2502
          %v2518 = vpack.c.bf16 %v2505, %v2504
          %v2519 = vpack.c.bf16 %v2507, %v2506
          %v2520 = vpack.c.bf16 %v2509, %v2508
          %v2521 = vpack.c.bf16 %v2511, %v2510
          %v2522 = vpack.c.bf16 %v2513, %v2512
          %v2523 = vpack.c.bf16 %v2515, %v2514
          %v2532 = vunpack.c.l.b16 %v2516
          %v2533 = vunpack.c.h.b16 %v2516
          %v2534 = vunpack.c.l.b16 %v2517
          %v2535 = vunpack.c.h.b16 %v2517
          %v2536 = vunpack.c.l.b16 %v2518
          %v2537 = vunpack.c.h.b16 %v2518
          %v2538 = vunpack.c.l.b16 %v2519
          %v2539 = vunpack.c.h.b16 %v2519
          %v2540 = vunpack.c.l.b16 %v2520
          %v2541 = vunpack.c.h.b16 %v2520
          %v2542 = vunpack.c.l.b16 %v2521
          %v2543 = vunpack.c.h.b16 %v2521
          %v2544 = vunpack.c.l.b16 %v2522
          %v2545 = vunpack.c.h.b16 %v2522
          %v2546 = vunpack.c.l.b16 %v2523
          %v2547 = vunpack.c.h.b16 %v2523
          %v2548 = vpack.c.b16 %v2532, %v2532
          %v2549 = vpack.c.b16 %v2533, %v2533
          %v2550 = vpack.c.b16 %v2534, %v2534
          %v2551 = vpack.c.b16 %v2535, %v2535
          %v2552 = vpack.c.b16 %v2536, %v2536
          %v2553 = vpack.c.b16 %v2537, %v2537
          %v2554 = vpack.c.b16 %v2538, %v2538
          %v2555 = vpack.c.b16 %v2539, %v2539
          %v2556 = vpack.c.b16 %v2540, %v2540
          %v2557 = vpack.c.b16 %v2541, %v2541
          %v2558 = vpack.c.b16 %v2542, %v2542
          %v2559 = vpack.c.b16 %v2543, %v2543
          %v2560 = vpack.c.b16 %v2544, %v2544
          %v2561 = vpack.c.b16 %v2545, %v2545
          %v2562 = vpack.c.b16 %v2546, %v2546
          %v2563 = vpack.c.b16 %v2547, %v2547
          %2580 = vst [vmem:[#allocation10] sm:$0xf] %v2548
          %2581 = vst [vmem:[#allocation10 + $0x4] sm:$0xf] %v2549
          %2582 = vst [vmem:[#allocation10 + $0x8] sm:$0xf] %v2550
          %2583 = vst [vmem:[#allocation10 + $0xc] sm:$0xf] %v2551
          %2584 = vst [vmem:[#allocation10 + $0x10] sm:$0xf] %v2552
          %2585 = vst [vmem:[#allocation10 + $0x14] sm:$0xf] %v2553
          %2586 = vst [vmem:[#allocation10 + $0x18] sm:$0xf] %v2554
          %2587 = vst [vmem:[#allocation10 + $0x1c] sm:$0xf] %v2555
          %2588 = vst [vmem:[#allocation10 + $0x20] sm:$0xf] %v2556
          %2589 = vst [vmem:[#allocation10 + $0x24] sm:$0xf] %v2557
          %2590 = vst [vmem:[#allocation10 + $0x28] sm:$0xf] %v2558
          %2591 = vst [vmem:[#allocation10 + $0x2c] sm:$0xf] %v2559
          %2592 = vst [vmem:[#allocation10 + $0x30] sm:$0xf] %v2560
          %2593 = vst [vmem:[#allocation10 + $0x34] sm:$0xf] %v2561
          %2594 = vst [vmem:[#allocation10 + $0x38] sm:$0xf] %v2562
          %2595 = vst [vmem:[#allocation10 + $0x3c] sm:$0xf] %v2563
        $region84: #{gnn_forward.1} parent=59 // pred_fallthru
          _
        // Predicated region
        $region85: #{gnn_forward.1} parent=59 // pred_check
          %p2596 = pneg %p308
        $region86: #{gnn_forward.1} parent=59 // pred_check_branch
          %2598 = sbr.rel (%p2596) target = $region88
        $region87: #{gnn_forward.1} parent=59 // pred_region
          %s2600 = ssub.s32 1024, 1024
          %2601 = vsyncadd [#allocation7], %s2600
          %s2602 = sshll.u32 [#allocation10], 4
          %s2603 = int_to_ptr.vmem [resolvable:$true] %s2602
          %2608 = dma.vmem_to_hbm [thread:$0]  %s2603, 1024, %s10, [#allocation7], 64, 64, 4
        $region88: #{gnn_forward.1} parent=59 // pred_fallthru
          _
        // Predicated region
        $region89: #{gnn_forward.1} parent=59 // pred_check
          %p2609 = pneg %p308
        $region90: #{gnn_forward.1} parent=59 // pred_check_branch
          %2611 = sbr.rel (%p2609) target = $region92
        $region91: #{gnn_forward.1} parent=59 // pred_region
          %2612 = dma.done [#allocation7], 1024
        $region92: #{gnn_forward.1} parent=59 // pred_fallthru
          _
      $region60: #{gnn_forward.1} parent=5 // pred_fallthru
        _
      %p2613 = scmp.le.s32.totalorder 2, %s23
      // Predicated region
      $region93: #{gnn_forward.1} parent=5 // pred_check
        %p2614 = pneg %p2613
      $region94: #{gnn_forward.1} parent=5 // pred_check_branch
        %2616 = sbr.rel (%p2614) target = $region96
      $region95: #{gnn_forward.1} parent=5 // pred_region
        %s2617 = ssub.s32 %s23, 2
      $region96: #{gnn_forward.1} parent=5 // pred_fallthru
        _
    $region6: #{gnn_forward.1} parent=1 // loop_footer
      %s27 = sadd.s32 1, %s23
    $region7: #{gnn_forward.1} parent=1 // loop_footer_branch
      %22 = sbr.rel target = $region3
    $region8: #{gnn_forward.1} parent=1 // loop_exit
      _
    %2618 = vsyncpa [#allocation6], 1
    %s2619 = scalar_lea.sflag [#allocation6], 1
    %2620 = vsyncpa %s2619, 1
    %2621 = vsyncpa [#allocation9], 1
    %s2622 = scalar_lea.sflag [#allocation9], 1
    %2623 = vsyncpa %s2622, 1
    %2624 = vsyncpa [#allocation7], 1
    %s2625 = scalar_lea.sflag [#allocation7], 1
    %2626 = vsyncpa %s2625, 1

</llo_original>
